<compile_context>
chip_gen: v7x
topology: tpu7x:2x2x1
jax: 0.10.0
libtpu: 0.0.40
codegen_flags: <defaults>
</compile_context>

<pallas_src>
import functools

import numpy as np
import jax
import jax.numpy as jnp
from jax.experimental import pallas as pl
from jax.experimental.pallas import tpu as pltpu

EPS = 1e-5


# ------------------------------------------------------------ VMEM budgeting
def _vmem_limit_bytes():
    """Scoped-VMEM limit derived per generation (v7x 64 MiB, v5e/v6e 128 MiB)."""
    cap = 64 * 1024 * 1024
    try:
        info = pltpu.get_tpu_info()
        cap = int(getattr(info, "vmem_capacity_bytes", cap))
    except Exception:
        pass
    # Leave headroom for compiler-internal scratch; cap at ~100 MiB.
    return int(min(max(cap - 20 * 1024 * 1024, 32 * 1024 * 1024),
                   100 * 1024 * 1024))


def _fused_vmem_estimate(b, t, d_in, d_model, d_out):
    """Rough peak of live f32 values in the fused kernel (1.5x slack)."""
    return int(1.5 * 4 * b * t * (3 * d_in + 6 * d_model + 4 * d_out))


def _pick_bb(b, t, d_in, d_model, d_out, budget):
    """Samples per grid step for the fallback: largest divisor of B that fits
    the VMEM budget while keeping >= 2 grid steps (both v7x TensorCores busy)."""
    per_sample = 8 * t * (3 * d_in + 6 * d_model + 4 * d_out)   # ~2x f32 (dbl buf)
    bb_max = max(1, budget // max(per_sample, 1))
    best = 1
    for d in range(1, b + 1):
        if b % d == 0 and d <= bb_max and (b // d >= 2 or b == 1):
            best = d
    return best


# --------------------------------------------------------------- weight prep
def _pack_conv_weight(w):
    """PyTorch Conv1d weight (Cout, Cin, 3) -> packed (3*Cin, Cout).

    Rows [k*Cin:(k+1)*Cin] hold tap k (k=0,1,2 for x[t-1], x[t], x[t+1]).
    Channels stay dense (no lane padding): no zero K rows, fewer HBM bytes.
    """
    w = jnp.transpose(w, (2, 1, 0)).astype(jnp.float32)       # (3, Cin, Cout)
    return w.reshape(3 * w.shape[1], w.shape[2])


def prepare_params(params):
    """One-time parameter prep.  Conv biases are dropped: a per-channel
    constant added before training-mode BatchNorm cancels in the mean."""
    w1, _b1, g1, be1, w2, _b2, g2, be2 = params
    gb1 = jnp.stack([g1, be1], axis=0).astype(jnp.float32)     # (2, d_model)
    gb2 = jnp.stack([g2, be2], axis=0).astype(jnp.float32)     # (2, d_out)
    return (_pack_conv_weight(w1), gb1, _pack_conv_weight(w2), gb2)


# ------------------------------------------------------------ kernel helpers
def _conv1d_k3(x3d, w):
    """Zero-padded k=3 conv along T.

    x3d: (BB, T, Cin) f32; w: (3*Cin, Cout) packed taps.  Shifted taps are
    built with a zero-row concat along T (sublane axis, per-sample padding),
    and each tap is its own small-K matmul (no unaligned lane concats).
    Returns (BB*T, Cout) f32.
    """
    bb, t, c = x3d.shape
    zero = jnp.zeros((bb, 1, c), jnp.float32)
    x_prev = jnp.concatenate([zero, x3d[:, : t - 1, :]], axis=1)   # x[t-1]
    x_next = jnp.concatenate([x3d[:, 1:, :], zero], axis=1)        # x[t+1]

    def mm(a, wk):
        return jnp.dot(a.reshape(bb * t, c), wk,
                       preferred_element_type=jnp.float32)

    return (mm(x_prev, w[0:c]) + mm(x3d, w[c:2 * c])
            + mm(x_next, w[2 * c:3 * c]))


def _bn_relu_train(h, gb, inv_n):
    """Training-mode BatchNorm (exact two-pass batch stats) + ReLU.

    h: (N, C) f32 holding the full normalization batch; gb: (2, C) gamma/beta.
    """
    mean = jnp.sum(h, axis=0, keepdims=True) * inv_n
    d = h - mean
    var = jnp.sum(d * d, axis=0, keepdims=True) * inv_n
    scale = gb[0:1, :] * jax.lax.rsqrt(var + EPS)
    shift = gb[1:2, :] - mean * scale
    return jnp.maximum(h * scale + shift, 0.0)


# ------------------------------------------------------ fused (small) kernel
def _fused_encoder_kernel(x_ref, w1_ref, gb1_ref, w2_ref, gb2_ref, o_ref):
    b, t, _ = x_ref.shape
    d_model = w1_ref.shape[1]
    d_out = w2_ref.shape[1]
    inv_n = 1.0 / (b * t)

    h1 = _conv1d_k3(x_ref[...], w1_ref[...])                  # (B*T, d_model)
    a1 = _bn_relu_train(h1, gb1_ref[...], inv_n)
    h2 = _conv1d_k3(a1.reshape(b, t, d_model), w2_ref[...])   # (B*T, d_out)
    a2 = _bn_relu_train(h2, gb2_ref[...], inv_n)
    o_ref[...] = a2.reshape(b, t, d_out)


def _call_fused(x, w1p, gb1, w2p, gb2, limit):
    b, t, _ = x.shape
    d_out = w2p.shape[1]
    return pl.pallas_call(
        _fused_encoder_kernel,
        out_shape=jax.ShapeDtypeStruct((b, t, d_out), jnp.float32),
        compiler_params=pltpu.CompilerParams(vmem_limit_bytes=limit),
    )(x, w1p, gb1, w2p, gb2)


# ------------------------------------------------- gridded (large) fallback
def _partial_stats(h):
    """Per-channel (sum, sumsq) of one block -> (2, C).  No zero rows."""
    s = jnp.sum(h, axis=0, keepdims=True)
    sq = jnp.sum(h * h, axis=0, keepdims=True)
    return jnp.concatenate([s, sq], axis=0)


def _conv_stats_kernel(x_ref, w_ref, h_ref, st_ref):
    bb, t, _ = x_ref.shape
    h = _conv1d_k3(x_ref[...], w_ref[...])            # (BB*T, Cout)
    h_ref[...] = h.reshape(bb, t, -1)
    st_ref[0] = _partial_stats(h)


def _bnrelu_conv_stats_kernel(h_ref, aff_ref, w_ref, o_ref, st_ref):
    bb, t, c = h_ref.shape
    h = h_ref[...].reshape(bb * t, c)
    a = jnp.maximum(h * aff_ref[0:1, :] + aff_ref[1:2, :], 0.0)
    h2 = _conv1d_k3(a.reshape(bb, t, c), w_ref[...])
    o_ref[...] = h2.reshape(bb, t, -1)
    st_ref[0] = _partial_stats(h2)


def _bnrelu_kernel(h_ref, aff_ref, o_ref):
    bb, t, c = h_ref.shape
    h = h_ref[...].reshape(bb * t, c)
    a = jnp.maximum(h * aff_ref[0:1, :] + aff_ref[1:2, :], 0.0)
    o_ref[...] = a.reshape(bb, t, c)


def _cparams(limit):
    return pltpu.CompilerParams(dimension_semantics=("parallel",),
                                vmem_limit_bytes=limit)


def _call_conv_stats(x, w, bb, limit):
    b, t, cin = x.shape
    cout = w.shape[1]
    nb = b // bb
    return pl.pallas_call(
        _conv_stats_kernel,
        grid=(nb,),
        in_specs=[pl.BlockSpec((bb, t, cin), lambda i: (i, 0, 0)),
                  pl.BlockSpec(w.shape, lambda i: (0, 0))],
        out_specs=(pl.BlockSpec((bb, t, cout), lambda i: (i, 0, 0)),
                   pl.BlockSpec((1, 2, cout), lambda i: (i, 0, 0))),
        out_shape=(jax.ShapeDtypeStruct((b, t, cout), jnp.float32),
                   jax.ShapeDtypeStruct((nb, 2, cout), jnp.float32)),
        compiler_params=_cparams(limit),
    )(x, w)


def _call_bnrelu_conv_stats(h, aff, w, bb, limit):
    b, t, c = h.shape
    cout = w.shape[1]
    nb = b // bb
    return pl.pallas_call(
        _bnrelu_conv_stats_kernel,
        grid=(nb,),
        in_specs=[pl.BlockSpec((bb, t, c), lambda i: (i, 0, 0)),
                  pl.BlockSpec(aff.shape, lambda i: (0, 0)),
                  pl.BlockSpec(w.shape, lambda i: (0, 0))],
        out_specs=(pl.BlockSpec((bb, t, cout), lambda i: (i, 0, 0)),
                   pl.BlockSpec((1, 2, cout), lambda i: (i, 0, 0))),
        out_shape=(jax.ShapeDtypeStruct((b, t, cout), jnp.float32),
                   jax.ShapeDtypeStruct((nb, 2, cout), jnp.float32)),
        compiler_params=_cparams(limit),
    )(h, aff, w)


def _call_bnrelu(h, aff, bb, limit):
    b, t, c = h.shape
    nb = b // bb
    return pl.pallas_call(
        _bnrelu_kernel,
        grid=(nb,),
        in_specs=[pl.BlockSpec((bb, t, c), lambda i: (i, 0, 0)),
                  pl.BlockSpec(aff.shape, lambda i: (0, 0))],
        out_specs=pl.BlockSpec((bb, t, c), lambda i: (i, 0, 0)),
        out_shape=jax.ShapeDtypeStruct((b, t, c), jnp.float32),
        compiler_params=_cparams(limit),
    )(h, aff)


def _bn_affine(stats, gb, n):
    """Reduce (nb, 2, C) partials to fused BN (scale, shift) rows (2, C).

    NOTE: one-pass sumsq/n - mean^2 is cancellation-prone for very large n;
    fine at these sizes/tolerances (the fused path uses exact two-pass stats).
    """
    s = jnp.sum(stats[:, 0, :], axis=0)
    sq = jnp.sum(stats[:, 1, :], axis=0)
    mean = s / n
    var = jnp.maximum(sq / n - mean * mean, 0.0)     # biased var (training BN)
    scale = gb[0] * jax.lax.rsqrt(var + EPS)
    shift = gb[1] - mean * scale
    return jnp.stack([scale, shift], axis=0)


# -------------------------------------------------------------------- forward
@functools.partial(jax.jit, static_argnames=("force_gridded",))
def encoder_forward(x, prep, *, force_gridded=False):
    """x: (B, T, d_input) f32 -> (B, T, d_output) f32 (training-mode BN)."""
    w1p, gb1, w2p, gb2 = prep
    b, t, d_in = x.shape
    d_model, d_out = w1p.shape[1], w2p.shape[1]
    limit = _vmem_limit_bytes()
    budget = int(limit * 0.6)
    x = x.astype(jnp.float32)

    if (not force_gridded
            and _fused_vmem_estimate(b, t, d_in, d_model, d_out) <= budget):
        # Whole batch resident in VMEM: one kernel, no HBM roundtrips.
        return _call_fused(x, w1p, gb1, w2p, gb2, limit)

    # Large-shape fallback: 3 pipelined passes over BB-sample blocks.
    n = b * t
    bb = _pick_bb(b, t, d_in, d_model, d_out, budget)
    h1, st1 = _call_conv_stats(x, w1p, bb, limit)        # conv1 + stats sweep
    aff1 = _bn_affine(st1, gb1, n)                       # fused BN1 scale/shift
    h2, st2 = _call_bnrelu_conv_stats(h1, aff1, w2p, bb, limit)
    aff2 = _bn_affine(st2, gb2, n)
    return _call_bnrelu(h2, aff2, bb, limit)             # bn2 + relu


# ------------------------------------------------------------------ reference
def encoder_ref(x, params):
    """Pure-JAX reference mirroring the PyTorch forward (training-mode BN)."""
    (w1, b1, g1, be1, w2, b2, g2, be2) = params
    xc = jnp.transpose(x, (0, 2, 1))                     # (B, C, T)

    def conv(a, w, b):
        out = jax.lax.conv_general_dilated(
            a, w, window_strides=(1,), padding=[(1, 1)],
            dimension_numbers=("NCH", "OIH", "NCH"))
        return out + b[None, :, None]

    def bn_relu(h, g, be):
        mean = jnp.mean(h, axis=(0, 2), keepdims=True)
        var = jnp.mean((h - mean) ** 2, axis=(0, 2), keepdims=True)
        hn = (h - mean) / jnp.sqrt(var + EPS)
        return jnp.maximum(hn * g[None, :, None] + be[None, :, None], 0.0)

    h = bn_relu(conv(xc, w1, b1), g1, be1)
    h = bn_relu(conv(h, w2, b2), g2, be2)
    return jnp.transpose(h, (0, 2, 1))                   # (B, T, d_output)


def make_params(key, d_input, d_model, d_output):
    ks = jax.random.split(key, 8)
    w1 = 0.1 * jax.random.normal(ks[0], (d_model, d_input, 3), jnp.float32)
    b1 = 0.1 * jax.random.normal(ks[1], (d_model,), jnp.float32)
    g1 = 1.0 + 0.1 * jax.random.normal(ks[2], (d_model,), jnp.float32)
    be1 = 0.1 * jax.random.normal(ks[3], (d_model,), jnp.float32)
    w2 = 0.1 * jax.random.normal(ks[4], (d_output, d_model, 3), jnp.float32)
    b2 = 0.1 * jax.random.normal(ks[5], (d_output,), jnp.float32)
    g2 = 1.0 + 0.1 * jax.random.normal(ks[6], (d_output,), jnp.float32)
    be2 = 0.1 * jax.random.normal(ks[7], (d_output,), jnp.float32)
    return (w1, b1, g1, be1, w2, b2, g2, be2)


if __name__ == "__main__":
    B, T = 4, 64
    # The module's bn2 is BatchNorm1d(d_model), so it only runs when
    # d_output == d_model; we honor that.
    d_input, d_model, d_output = 8, 32, 32

    key = jax.random.PRNGKey(0)
    kx, kp = jax.random.split(key)
    x = jax.random.normal(kx, (B, T, d_input), jnp.float32)
    params = make_params(kp, d_input, d_model, d_output)

    prep = prepare_params(params)                        # one-time weight prep
    ref = jax.block_until_ready(encoder_ref(x, params))

    # Primary path: single fused kernel (whole batch in VMEM).
    out_fused = jax.block_until_ready(encoder_forward(x, prep))
    np.testing.assert_allclose(np.asarray(out_fused), np.asarray(ref),
                               rtol=1e-4, atol=1e-4)

    # Also exercise the gridded large-shape fallback (BB-sample blocks).
    out_grid = jax.block_until_ready(
        encoder_forward(x, prep, force_gridded=True))
    np.testing.assert_allclose(np.asarray(out_grid), np.asarray(ref),
                               rtol=1e-4, atol=1e-4)

    print("KERNEL_OK")
</pallas_src>

<mosaic_0001>
module attributes {stable_mosaic.version = 11 : i64} {
  func.func @_fused_encoder_kernel(%arg0: memref<4x64x8xf32, #tpu.memory_space<vmem>>, %arg1: memref<24x32xf32, #tpu.memory_space<vmem>>, %arg2: memref<2x32xf32, #tpu.memory_space<vmem>>, %arg3: memref<96x32xf32, #tpu.memory_space<vmem>>, %arg4: memref<2x32xf32, #tpu.memory_space<vmem>>, %arg5: memref<4x64x32xf32, #tpu.memory_space<vmem>>) attributes {dimension_semantics = [], scalar_prefetch = 0 : i64, scratch_operands = 0 : i64, tpu.core_type = #tpu.core_type<tc>} {
    %c0 = arith.constant 0 : index
    %c0_0 = arith.constant 0 : index
    %c0_1 = arith.constant 0 : index
    %0 = vector.load %arg0[%c0, %c0_0, %c0_1] : memref<4x64x8xf32, #tpu.memory_space<vmem>>, vector<4x64x8xf32>
    %c0_2 = arith.constant 0 : index
    %c0_3 = arith.constant 0 : index
    %1 = vector.load %arg1[%c0_2, %c0_3] : memref<24x32xf32, #tpu.memory_space<vmem>>, vector<24x32xf32>
    %cst = arith.constant 0.000000e+00 : f32
    %2 = vector.broadcast %cst : f32 to vector<4x1x8xf32>
    %3 = vector.extract_strided_slice %0 {offsets = [0, 0, 0], sizes = [4, 63, 8], strides = [1, 1, 1]} : vector<4x64x8xf32> to vector<4x63x8xf32>
    %4 = tpu.concatenate %2, %3 in 1 : vector<4x1x8xf32>, vector<4x63x8xf32> -> vector<4x64x8xf32>
    %5 = vector.extract_strided_slice %0 {offsets = [0, 1, 0], sizes = [4, 63, 8], strides = [1, 1, 1]} : vector<4x64x8xf32> to vector<4x63x8xf32>
    %6 = tpu.concatenate %5, %2 in 1 : vector<4x63x8xf32>, vector<4x1x8xf32> -> vector<4x64x8xf32>
    %7 = vector.extract_strided_slice %1 {offsets = [0, 0], sizes = [8, 32], strides = [1, 1]} : vector<24x32xf32> to vector<8x32xf32>
    %8 = vector.shape_cast %4 : vector<4x64x8xf32> to vector<256x8xf32>
    %cst_4 = arith.constant dense<0.000000e+00> : vector<256x32xf32>
    %9 = tpu.matmul %8, %7, %cst_4 {dimension_numbers = #tpu.dot_dimension_numbers<[1], [0], [0], [1], [0, 0, 1, 1], [], []>} : vector<256x8xf32>, vector<8x32xf32>, vector<256x32xf32> -> vector<256x32xf32>
    %10 = vector.extract_strided_slice %1 {offsets = [8, 0], sizes = [8, 32], strides = [1, 1]} : vector<24x32xf32> to vector<8x32xf32>
    %11 = vector.shape_cast %0 : vector<4x64x8xf32> to vector<256x8xf32>
    %cst_5 = arith.constant dense<0.000000e+00> : vector<256x32xf32>
    %12 = tpu.matmul %11, %10, %cst_5 {dimension_numbers = #tpu.dot_dimension_numbers<[1], [0], [0], [1], [0, 0, 1, 1], [], []>} : vector<256x8xf32>, vector<8x32xf32>, vector<256x32xf32> -> vector<256x32xf32>
    %13 = arith.addf %9, %12 : vector<256x32xf32>
    %14 = vector.extract_strided_slice %1 {offsets = [16, 0], sizes = [8, 32], strides = [1, 1]} : vector<24x32xf32> to vector<8x32xf32>
    %15 = vector.shape_cast %6 : vector<4x64x8xf32> to vector<256x8xf32>
    %cst_6 = arith.constant dense<0.000000e+00> : vector<256x32xf32>
    %16 = tpu.matmul %15, %14, %cst_6 {dimension_numbers = #tpu.dot_dimension_numbers<[1], [0], [0], [1], [0, 0, 1, 1], [], []>} : vector<256x8xf32>, vector<8x32xf32>, vector<256x32xf32> -> vector<256x32xf32>
    %17 = arith.addf %13, %16 : vector<256x32xf32>
    %c0_7 = arith.constant 0 : index
    %c0_8 = arith.constant 0 : index
    %18 = vector.load %arg2[%c0_7, %c0_8] : memref<2x32xf32, #tpu.memory_space<vmem>>, vector<2x32xf32>
    %cst_9 = arith.constant dense<0.000000e+00> : vector<32xf32>
    %19 = vector.multi_reduction <add>, %17, %cst_9 [0] : vector<256x32xf32> to vector<32xf32>
    %20 = vector.shape_cast %19 : vector<32xf32> to vector<1x32xf32>
    %cst_10 = arith.constant 3.906250e-03 : f32
    %21 = vector.broadcast %cst_10 : f32 to vector<1x32xf32>
    %22 = arith.mulf %20, %21 : vector<1x32xf32>
    %23 = vector.broadcast %22 : vector<1x32xf32> to vector<256x32xf32>
    %24 = arith.subf %17, %23 : vector<256x32xf32>
    %25 = arith.mulf %24, %24 : vector<256x32xf32>
    %cst_11 = arith.constant dense<0.000000e+00> : vector<32xf32>
    %26 = vector.multi_reduction <add>, %25, %cst_11 [0] : vector<256x32xf32> to vector<32xf32>
    %27 = vector.shape_cast %26 : vector<32xf32> to vector<1x32xf32>
    %cst_12 = arith.constant 3.906250e-03 : f32
    %28 = vector.broadcast %cst_12 : f32 to vector<1x32xf32>
    %29 = arith.mulf %27, %28 : vector<1x32xf32>
    %30 = vector.extract_strided_slice %18 {offsets = [0, 0], sizes = [1, 32], strides = [1, 1]} : vector<2x32xf32> to vector<1x32xf32>
    %cst_13 = arith.constant 9.99999974E-6 : f32
    %31 = vector.broadcast %cst_13 : f32 to vector<1x32xf32>
    %32 = arith.addf %29, %31 : vector<1x32xf32>
    %33 = math.rsqrt %32 : vector<1x32xf32>
    %34 = arith.mulf %30, %33 : vector<1x32xf32>
    %35 = vector.extract_strided_slice %18 {offsets = [1, 0], sizes = [1, 32], strides = [1, 1]} : vector<2x32xf32> to vector<1x32xf32>
    %36 = arith.mulf %22, %34 : vector<1x32xf32>
    %37 = arith.subf %35, %36 : vector<1x32xf32>
    %38 = vector.broadcast %34 : vector<1x32xf32> to vector<256x32xf32>
    %39 = arith.mulf %17, %38 : vector<256x32xf32>
    %40 = vector.broadcast %37 : vector<1x32xf32> to vector<256x32xf32>
    %41 = arith.addf %39, %40 : vector<256x32xf32>
    %cst_14 = arith.constant 0.000000e+00 : f32
    %42 = vector.broadcast %cst_14 : f32 to vector<256x32xf32>
    %43 = arith.maximumf %41, %42 : vector<256x32xf32>
    %44 = vector.shape_cast %43 : vector<256x32xf32> to vector<4x64x32xf32>
    %c0_15 = arith.constant 0 : index
    %c0_16 = arith.constant 0 : index
    %45 = vector.load %arg3[%c0_15, %c0_16] : memref<96x32xf32, #tpu.memory_space<vmem>>, vector<96x32xf32>
    %cst_17 = arith.constant 0.000000e+00 : f32
    %46 = vector.broadcast %cst_17 : f32 to vector<4x1x32xf32>
    %47 = vector.extract_strided_slice %44 {offsets = [0, 0, 0], sizes = [4, 63, 32], strides = [1, 1, 1]} : vector<4x64x32xf32> to vector<4x63x32xf32>
    %48 = tpu.concatenate %46, %47 in 1 : vector<4x1x32xf32>, vector<4x63x32xf32> -> vector<4x64x32xf32>
    %49 = vector.extract_strided_slice %44 {offsets = [0, 1, 0], sizes = [4, 63, 32], strides = [1, 1, 1]} : vector<4x64x32xf32> to vector<4x63x32xf32>
    %50 = tpu.concatenate %49, %46 in 1 : vector<4x63x32xf32>, vector<4x1x32xf32> -> vector<4x64x32xf32>
    %51 = vector.extract_strided_slice %45 {offsets = [0, 0], sizes = [32, 32], strides = [1, 1]} : vector<96x32xf32> to vector<32x32xf32>
    %52 = vector.shape_cast %48 : vector<4x64x32xf32> to vector<256x32xf32>
    %cst_18 = arith.constant dense<0.000000e+00> : vector<256x32xf32>
    %53 = tpu.matmul %52, %51, %cst_18 {dimension_numbers = #tpu.dot_dimension_numbers<[1], [0], [0], [1], [0, 0, 1, 1], [], []>} : vector<256x32xf32>, vector<32x32xf32>, vector<256x32xf32> -> vector<256x32xf32>
    %54 = vector.extract_strided_slice %45 {offsets = [32, 0], sizes = [32, 32], strides = [1, 1]} : vector<96x32xf32> to vector<32x32xf32>
    %55 = vector.shape_cast %44 : vector<4x64x32xf32> to vector<256x32xf32>
    %cst_19 = arith.constant dense<0.000000e+00> : vector<256x32xf32>
    %56 = tpu.matmul %55, %54, %cst_19 {dimension_numbers = #tpu.dot_dimension_numbers<[1], [0], [0], [1], [0, 0, 1, 1], [], []>} : vector<256x32xf32>, vector<32x32xf32>, vector<256x32xf32> -> vector<256x32xf32>
    %57 = arith.addf %53, %56 : vector<256x32xf32>
    %58 = vector.extract_strided_slice %45 {offsets = [64, 0], sizes = [32, 32], strides = [1, 1]} : vector<96x32xf32> to vector<32x32xf32>
    %59 = vector.shape_cast %50 : vector<4x64x32xf32> to vector<256x32xf32>
    %cst_20 = arith.constant dense<0.000000e+00> : vector<256x32xf32>
    %60 = tpu.matmul %59, %58, %cst_20 {dimension_numbers = #tpu.dot_dimension_numbers<[1], [0], [0], [1], [0, 0, 1, 1], [], []>} : vector<256x32xf32>, vector<32x32xf32>, vector<256x32xf32> -> vector<256x32xf32>
    %61 = arith.addf %57, %60 : vector<256x32xf32>
    %c0_21 = arith.constant 0 : index
    %c0_22 = arith.constant 0 : index
    %62 = vector.load %arg4[%c0_21, %c0_22] : memref<2x32xf32, #tpu.memory_space<vmem>>, vector<2x32xf32>
    %cst_23 = arith.constant dense<0.000000e+00> : vector<32xf32>
    %63 = vector.multi_reduction <add>, %61, %cst_23 [0] : vector<256x32xf32> to vector<32xf32>
    %64 = vector.shape_cast %63 : vector<32xf32> to vector<1x32xf32>
    %cst_24 = arith.constant 3.906250e-03 : f32
    %65 = vector.broadcast %cst_24 : f32 to vector<1x32xf32>
    %66 = arith.mulf %64, %65 : vector<1x32xf32>
    %67 = vector.broadcast %66 : vector<1x32xf32> to vector<256x32xf32>
    %68 = arith.subf %61, %67 : vector<256x32xf32>
    %69 = arith.mulf %68, %68 : vector<256x32xf32>
    %cst_25 = arith.constant dense<0.000000e+00> : vector<32xf32>
    %70 = vector.multi_reduction <add>, %69, %cst_25 [0] : vector<256x32xf32> to vector<32xf32>
    %71 = vector.shape_cast %70 : vector<32xf32> to vector<1x32xf32>
    %cst_26 = arith.constant 3.906250e-03 : f32
    %72 = vector.broadcast %cst_26 : f32 to vector<1x32xf32>
    %73 = arith.mulf %71, %72 : vector<1x32xf32>
    %74 = vector.extract_strided_slice %62 {offsets = [0, 0], sizes = [1, 32], strides = [1, 1]} : vector<2x32xf32> to vector<1x32xf32>
    %cst_27 = arith.constant 9.99999974E-6 : f32
    %75 = vector.broadcast %cst_27 : f32 to vector<1x32xf32>
    %76 = arith.addf %73, %75 : vector<1x32xf32>
    %77 = math.rsqrt %76 : vector<1x32xf32>
    %78 = arith.mulf %74, %77 : vector<1x32xf32>
    %79 = vector.extract_strided_slice %62 {offsets = [1, 0], sizes = [1, 32], strides = [1, 1]} : vector<2x32xf32> to vector<1x32xf32>
    %80 = arith.mulf %66, %78 : vector<1x32xf32>
    %81 = arith.subf %79, %80 : vector<1x32xf32>
    %82 = vector.broadcast %78 : vector<1x32xf32> to vector<256x32xf32>
    %83 = arith.mulf %61, %82 : vector<256x32xf32>
    %84 = vector.broadcast %81 : vector<1x32xf32> to vector<256x32xf32>
    %85 = arith.addf %83, %84 : vector<256x32xf32>
    %cst_28 = arith.constant 0.000000e+00 : f32
    %86 = vector.broadcast %cst_28 : f32 to vector<256x32xf32>
    %87 = arith.maximumf %85, %86 : vector<256x32xf32>
    %88 = vector.shape_cast %87 : vector<256x32xf32> to vector<4x64x32xf32>
    %c0_29 = arith.constant 0 : index
    %c0_30 = arith.constant 0 : index
    %c0_31 = arith.constant 0 : index
    %89 = vector.load %arg5[%c0_29, %c0_30, %c0_31] : memref<4x64x32xf32, #tpu.memory_space<vmem>>, vector<4x64x32xf32>
    tpu.vector_store %arg5[%c0_29, %c0_30, %c0_31], %88 {strides = array<i32>} : memref<4x64x32xf32, #tpu.memory_space<vmem>>, vector<4x64x32xf32>,
    return
  }
}

</mosaic_0001>

<llo_original>
// kernel: encoder_forward.1
$region0: #{encoder_forward.1}
  #allocation0 [shape = 'u32[]', space=smem, size = 0x4, offset = 0x4, fixed_abs, tag = 'smem constant byte address 0x4 - core index']
  #allocation1 [shape = 'u32[144,128]{1,0:T(1,128)}', space=vmem, size = 0x12000, scoped, tag = 'internal scratch']
  %s0 = inlined_call_operand.vmem [shape: f32[4,64,8], index: 0, kind: input, shape index: {}]
  %s1 = inlined_call_operand.vmem [shape: f32[24,32], index: 1, kind: input, shape index: {}]
  %s2 = inlined_call_operand.vmem [shape: f32[2,32], index: 2, kind: input, shape index: {}]
  %s3 = inlined_call_operand.vmem [shape: f32[96,32], index: 3, kind: input, shape index: {}]
  %s4 = inlined_call_operand.vmem [shape: f32[2,32], index: 4, kind: input, shape index: {}]
  %s5 = inlined_call_operand.vmem [shape: f32[4,64,32], index: 5, kind: output, shape index: {}]
  %s6 = sld [smem:[#allocation0]]
  $region30: #{encoder_forward.1} parent=0
    _
  %s8 = ssub.s32 1, %s6
  %s9 = scalar_select 0, %s8, %s6
  // Predicated region
  $region2: #{encoder_forward.1} parent=0 // pred_check
    _
  $region3: #{encoder_forward.1} parent=0 // pred_check_branch
    %11 = sbr.rel (0) target = $region5
  $region4: #{encoder_forward.1} parent=0 // pred_region
    _
  $region5: #{encoder_forward.1} parent=0 // pred_fallthru
    _
  // Predicated region
  $region6: #{encoder_forward.1} parent=0 // pred_check
    _
  $region7: #{encoder_forward.1} parent=0 // pred_check_branch
    %13 = sbr.rel (0) target = $region9
  $region8: #{encoder_forward.1} parent=0 // pred_region
    _
  $region9: #{encoder_forward.1} parent=0 // pred_fallthru
    _
  // Predicated region
  $region10: #{encoder_forward.1} parent=0 // pred_check
    _
  $region11: #{encoder_forward.1} parent=0 // pred_check_branch
    %15 = sbr.rel (0) target = $region13
  $region12: #{encoder_forward.1} parent=0 // pred_region
    _
  $region13: #{encoder_forward.1} parent=0 // pred_fallthru
    _
  // Predicated region
  $region14: #{encoder_forward.1} parent=0 // pred_check
    _
  $region15: #{encoder_forward.1} parent=0 // pred_check_branch
    %17 = sbr.rel (0) target = $region17
  $region16: #{encoder_forward.1} parent=0 // pred_region
    _
  $region17: #{encoder_forward.1} parent=0 // pred_fallthru
    _
  // Predicated region
  $region18: #{encoder_forward.1} parent=0 // pred_check
    _
  $region19: #{encoder_forward.1} parent=0 // pred_check_branch
    %19 = sbr.rel (0) target = $region21
  $region20: #{encoder_forward.1} parent=0 // pred_region
    _
  $region21: #{encoder_forward.1} parent=0 // pred_fallthru
    _
  %v20 = vld [vmem:[%s0] sm:$0xff]
  %v21 = vld [vmem:[%s0 + $0x8] sm:$0xff]
  %v22 = vld [vmem:[%s0 + $0x10] sm:$0xff]
  %v23 = vld [vmem:[%s0 + $0x18] sm:$0xff]
  %v24 = vld [vmem:[%s0 + $0x20] sm:$0xff]
  %v25 = vld [vmem:[%s0 + $0x28] sm:$0xff]
  %v26 = vld [vmem:[%s0 + $0x30] sm:$0xff]
  %v27 = vld [vmem:[%s0 + $0x38] sm:$0xff]
  %v28 = vld [vmem:[%s0 + $0x40] sm:$0xff]
  %v29 = vld [vmem:[%s0 + $0x48] sm:$0xff]
  %v30 = vld [vmem:[%s0 + $0x50] sm:$0xff]
  %v31 = vld [vmem:[%s0 + $0x58] sm:$0xff]
  %v32 = vld [vmem:[%s0 + $0x60] sm:$0xff]
  %v33 = vld [vmem:[%s0 + $0x68] sm:$0xff]
  %v34 = vld [vmem:[%s0 + $0x70] sm:$0xff]
  %v35 = vld [vmem:[%s0 + $0x78] sm:$0xff]
  %v36 = vld [vmem:[%s0 + $0x80] sm:$0xff]
  %v37 = vld [vmem:[%s0 + $0x88] sm:$0xff]
  %v38 = vld [vmem:[%s0 + $0x90] sm:$0xff]
  %v39 = vld [vmem:[%s0 + $0x98] sm:$0xff]
  %v40 = vld [vmem:[%s0 + $0xa0] sm:$0xff]
  %v41 = vld [vmem:[%s0 + $0xa8] sm:$0xff]
  %v42 = vld [vmem:[%s0 + $0xb0] sm:$0xff]
  %v43 = vld [vmem:[%s0 + $0xb8] sm:$0xff]
  %v44 = vld [vmem:[%s0 + $0xc0] sm:$0xff]
  %v45 = vld [vmem:[%s0 + $0xc8] sm:$0xff]
  %v46 = vld [vmem:[%s0 + $0xd0] sm:$0xff]
  %v47 = vld [vmem:[%s0 + $0xd8] sm:$0xff]
  %v48 = vld [vmem:[%s0 + $0xe0] sm:$0xff]
  %v49 = vld [vmem:[%s0 + $0xe8] sm:$0xff]
  %v50 = vld [vmem:[%s0 + $0xf0] sm:$0xff]
  %v51 = vld [vmem:[%s0 + $0xf8] sm:$0xff]
  %v52 = vld [vmem:[%s1] sm:$0xff]
  %v53 = vld [vmem:[%s1 + $0x8] sm:$0xff]
  %v54 = vld [vmem:[%s1 + $0x10] sm:$0xff]
  %vm87 = vcmask 1040384
  %v88 = vrot.slane %v20, 7
  %v89 = vrot.slane %v21, 7
  %v90 = vsel %vm87, %v88, %v89
  %v91 = vrot.slane %v22, 7
  %v92 = vsel %vm87, %v89, %v91
  %v93 = vrot.slane %v23, 7
  %v94 = vsel %vm87, %v91, %v93
  %v95 = vrot.slane %v24, 7
  %v96 = vsel %vm87, %v93, %v95
  %v97 = vrot.slane %v25, 7
  %v98 = vsel %vm87, %v95, %v97
  %v99 = vrot.slane %v26, 7
  %v100 = vsel %vm87, %v97, %v99
  %v101 = vrot.slane %v27, 7
  %v102 = vsel %vm87, %v99, %v101
  %v103 = vrot.slane %v28, 7
  %v104 = vrot.slane %v29, 7
  %v105 = vsel %vm87, %v103, %v104
  %v106 = vrot.slane %v30, 7
  %v107 = vsel %vm87, %v104, %v106
  %v108 = vrot.slane %v31, 7
  %v109 = vsel %vm87, %v106, %v108
  %v110 = vrot.slane %v32, 7
  %v111 = vsel %vm87, %v108, %v110
  %v112 = vrot.slane %v33, 7
  %v113 = vsel %vm87, %v110, %v112
  %v114 = vrot.slane %v34, 7
  %v115 = vsel %vm87, %v112, %v114
  %v116 = vrot.slane %v35, 7
  %v117 = vsel %vm87, %v114, %v116
  %v118 = vrot.slane %v36, 7
  %v119 = vrot.slane %v37, 7
  %v120 = vsel %vm87, %v118, %v119
  %v121 = vrot.slane %v38, 7
  %v122 = vsel %vm87, %v119, %v121
  %v123 = vrot.slane %v39, 7
  %v124 = vsel %vm87, %v121, %v123
  %v125 = vrot.slane %v40, 7
  %v126 = vsel %vm87, %v123, %v125
  %v127 = vrot.slane %v41, 7
  %v128 = vsel %vm87, %v125, %v127
  %v129 = vrot.slane %v42, 7
  %v130 = vsel %vm87, %v127, %v129
  %v131 = vrot.slane %v43, 7
  %v132 = vsel %vm87, %v129, %v131
  %v133 = vrot.slane %v44, 7
  %v134 = vrot.slane %v45, 7
  %v135 = vsel %vm87, %v133, %v134
  %v136 = vrot.slane %v46, 7
  %v137 = vsel %vm87, %v134, %v136
  %v138 = vrot.slane %v47, 7
  %v139 = vsel %vm87, %v136, %v138
  %v140 = vrot.slane %v48, 7
  %v141 = vsel %vm87, %v138, %v140
  %v142 = vrot.slane %v49, 7
  %v143 = vsel %vm87, %v140, %v142
  %v144 = vrot.slane %v50, 7
  %v145 = vsel %vm87, %v142, %v144
  %v146 = vrot.slane %v51, 7
  %v147 = vsel %vm87, %v144, %v146
  %v152 = vsel %vm87, 0.0, %v88
  %v153 = vsel %vm87, 0.0, %v103
  %v154 = vsel %vm87, 0.0, %v118
  %v155 = vsel %vm87, 0.0, %v133
  %vm156 = vcmask 1046528
  %v157 = vrot.slane %v20, 1
  %v158 = vrot.slane %v21, 1
  %v159 = vsel %vm156, %v157, %v158
  %v160 = vrot.slane %v22, 1
  %v161 = vsel %vm156, %v158, %v160
  %v162 = vrot.slane %v23, 1
  %v163 = vsel %vm156, %v160, %v162
  %v164 = vrot.slane %v24, 1
  %v165 = vsel %vm156, %v162, %v164
  %v166 = vrot.slane %v25, 1
  %v167 = vsel %vm156, %v164, %v166
  %v168 = vrot.slane %v26, 1
  %v169 = vsel %vm156, %v166, %v168
  %v170 = vrot.slane %v27, 1
  %v171 = vsel %vm156, %v168, %v170
  %v172 = vrot.slane %v28, 1
  %v173 = vrot.slane %v29, 1
  %v174 = vsel %vm156, %v172, %v173
  %v175 = vrot.slane %v30, 1
  %v176 = vsel %vm156, %v173, %v175
  %v177 = vrot.slane %v31, 1
  %v178 = vsel %vm156, %v175, %v177
  %v179 = vrot.slane %v32, 1
  %v180 = vsel %vm156, %v177, %v179
  %v181 = vrot.slane %v33, 1
  %v182 = vsel %vm156, %v179, %v181
  %v183 = vrot.slane %v34, 1
  %v184 = vsel %vm156, %v181, %v183
  %v185 = vrot.slane %v35, 1
  %v186 = vsel %vm156, %v183, %v185
  %v187 = vrot.slane %v36, 1
  %v188 = vrot.slane %v37, 1
  %v189 = vsel %vm156, %v187, %v188
  %v190 = vrot.slane %v38, 1
  %v191 = vsel %vm156, %v188, %v190
  %v192 = vrot.slane %v39, 1
  %v193 = vsel %vm156, %v190, %v192
  %v194 = vrot.slane %v40, 1
  %v195 = vsel %vm156, %v192, %v194
  %v196 = vrot.slane %v41, 1
  %v197 = vsel %vm156, %v194, %v196
  %v198 = vrot.slane %v42, 1
  %v199 = vsel %vm156, %v196, %v198
  %v200 = vrot.slane %v43, 1
  %v201 = vsel %vm156, %v198, %v200
  %v202 = vrot.slane %v44, 1
  %v203 = vrot.slane %v45, 1
  %v204 = vsel %vm156, %v202, %v203
  %v205 = vrot.slane %v46, 1
  %v206 = vsel %vm156, %v203, %v205
  %v207 = vrot.slane %v47, 1
  %v208 = vsel %vm156, %v205, %v207
  %v209 = vrot.slane %v48, 1
  %v210 = vsel %vm156, %v207, %v209
  %v211 = vrot.slane %v49, 1
  %v212 = vsel %vm156, %v209, %v211
  %v213 = vrot.slane %v50, 1
  %v214 = vsel %vm156, %v211, %v213
  %v215 = vrot.slane %v51, 1
  %v216 = vsel %vm156, %v213, %v215
  %v221 = vsel %vm156, %v170, 0.0
  %v222 = vsel %vm156, %v185, 0.0
  %v223 = vsel %vm156, %v200, 0.0
  %v224 = vsel %vm156, %v215, 0.0
  %vm225 = vcmask 64512
  %v226 = vsel %vm225, %v20, 0
  %v228 = vsel %vm225, %v21, 0
  %v230 = vsel %vm225, %v22, 0
  %v232 = vsel %vm225, %v23, 0
  %v234 = vsel %vm225, %v24, 0
  %v236 = vsel %vm225, %v25, 0
  %v238 = vsel %vm225, %v26, 0
  %v240 = vsel %vm225, %v27, 0
  %v242 = vsel %vm225, %v28, 0
  %v244 = vsel %vm225, %v29, 0
  %v246 = vsel %vm225, %v30, 0
  %v248 = vsel %vm225, %v31, 0
  %v250 = vsel %vm225, %v32, 0
  %v252 = vsel %vm225, %v33, 0
  %v254 = vsel %vm225, %v34, 0
  %v256 = vsel %vm225, %v35, 0
  %v258 = vsel %vm225, %v36, 0
  %v260 = vsel %vm225, %v37, 0
  %v262 = vsel %vm225, %v38, 0
  %v264 = vsel %vm225, %v39, 0
  %v266 = vsel %vm225, %v40, 0
  %v268 = vsel %vm225, %v41, 0
  %v270 = vsel %vm225, %v42, 0
  %v272 = vsel %vm225, %v43, 0
  %v274 = vsel %vm225, %v44, 0
  %v276 = vsel %vm225, %v45, 0
  %v278 = vsel %vm225, %v46, 0
  %v280 = vsel %vm225, %v47, 0
  %v282 = vsel %vm225, %v48, 0
  %v284 = vsel %vm225, %v49, 0
  %v286 = vsel %vm225, %v50, 0
  %v288 = vsel %vm225, %v51, 0
  %290 = vmatprep.subr.mxu0 0.0
  %291 = vmatpush1.msra.mxu0 %v53
  %292 = vmatprep.subr.mxu0 0.0
  %293 = vmatpush1.msra.mxu0 0.0
  %294 = vmatprep.subr.mxu0 0.0
  %295 = vmatpush1.msra.mxu0 0.0
  %296 = vmatprep.subr.mxu0 0.0
  %297 = vmatpush1.msra.mxu0 0.0
  %298 = vmatprep.subr.mxu0 0.0
  %299 = vmatpush1.msra.mxu0 0.0
  %300 = vmatprep.subr.mxu0 0.0
  %301 = vmatpush1.msra.mxu0 0.0
  %302 = vmatprep.subr.mxu0 0.0
  %303 = vmatpush1.msra.mxu0 0.0
  %304 = vmatprep.subr.mxu0 0.0
  %305 = vmatpush1.msra.mxu0 0.0
  %306 = vmatprep.subr.mxu0 0.0
  %307 = vmatpush1.msra.mxu0 0.0
  %308 = vmatprep.subr.mxu0 0.0
  %309 = vmatpush1.msra.mxu0 0.0
  %310 = vmatprep.subr.mxu0 0.0
  %311 = vmatpush1.msra.mxu0 0.0
  %312 = vmatprep.subr.mxu0 0.0
  %313 = vmatpush1.msra.mxu0 0.0
  %314 = vmatprep.subr.mxu0 0.0
  %315 = vmatpush1.msra.mxu0 0.0
  %316 = vmatprep.subr.mxu0 0.0
  %317 = vmatpush1.msra.mxu0 0.0
  %318 = vmatprep.subr.mxu0 0.0
  %319 = vmatpush1.msra.mxu0 0.0
  %320 = vmatprep.subr.mxu0 0.0
  %321 = vmatpush1.msra.mxu0 0.0
  %322 = vmatprep.subr.mxu0 0.0
  %323 = vmatpush1.msra.mxu0 0.0
  %324 = vmatprep.subr.mxu0 0.0
  %325 = vmatpush1.msra.mxu0 0.0
  %326 = vmatprep.subr.mxu0 0.0
  %327 = vmatpush1.msra.mxu0 0.0
  %328 = vmatprep.subr.mxu0 0.0
  %329 = vmatpush1.msra.mxu0 0.0
  %330 = vmatprep.subr.mxu0 0.0
  %331 = vmatpush1.msra.mxu0 0.0
  %332 = vmatprep.subr.mxu0 0.0
  %333 = vmatpush1.msra.mxu0 0.0
  %334 = vmatprep.subr.mxu0 0.0
  %335 = vmatpush1.msra.mxu0 0.0
  %336 = vmatprep.subr.mxu0 0.0
  %337 = vmatpush1.msra.mxu0 0.0
  %338 = vmatprep.subr.mxu0 0.0
  %339 = vmatpush1.msra.mxu0 0.0
  %340 = vmatprep.subr.mxu0 0.0
  %341 = vmatpush1.msra.mxu0 0.0
  %342 = vmatprep.subr.mxu0 0.0
  %343 = vmatpush1.msra.mxu0 0.0
  %344 = vmatprep.subr.mxu0 0.0
  %345 = vmatpush1.msra.mxu0 0.0
  %346 = vmatprep.subr.mxu0 0.0
  %347 = vmatpush1.msra.mxu0 0.0
  %348 = vmatprep.subr.mxu0 0.0
  %349 = vmatpush1.msra.mxu0 0.0
  %350 = vmatprep.subr.mxu0 0.0
  %351 = vmatpush1.msra.mxu0 0.0
  %352 = vmatprep.subr.mxu0 0.0
  %353 = vmatpush1.msra.mxu0 0.0
  %354 = vmatprep.mubr.f32.mxu0 0.0
  %355 = vmatmul.mubr.f32.gmra.mrb[0].mxu0 %v226
  %v356 = vpop.f32.mrb[0].mxu0
  %v357 = vadd.f32 0.0, %v356
  %v358 = vpop.f32.mrb[0].mxu0
  %359 = vmatprep.mubr.f32.mxu0 0.0
  %360 = vmatmul.mubr.f32.gmra.mrb[0].mxu0 %v228
  %v361 = vpop.f32.mrb[0].mxu0
  %v362 = vadd.f32 0.0, %v361
  %v363 = vpop.f32.mrb[0].mxu0
  %364 = vmatprep.mubr.f32.mxu0 0.0
  %365 = vmatmul.mubr.f32.gmra.mrb[0].mxu0 %v230
  %v366 = vpop.f32.mrb[0].mxu0
  %v367 = vadd.f32 0.0, %v366
  %v368 = vpop.f32.mrb[0].mxu0
  %369 = vmatprep.mubr.f32.mxu0 0.0
  %370 = vmatmul.mubr.f32.gmra.mrb[0].mxu0 %v232
  %v371 = vpop.f32.mrb[0].mxu0
  %v372 = vadd.f32 0.0, %v371
  %v373 = vpop.f32.mrb[0].mxu0
  %374 = vmatprep.mubr.f32.mxu0 0.0
  %375 = vmatmul.mubr.f32.gmra.mrb[0].mxu0 %v234
  %v376 = vpop.f32.mrb[0].mxu0
  %v377 = vadd.f32 0.0, %v376
  %v378 = vpop.f32.mrb[0].mxu0
  %379 = vmatprep.mubr.f32.mxu0 0.0
  %380 = vmatmul.mubr.f32.gmra.mrb[0].mxu0 %v236
  %v381 = vpop.f32.mrb[0].mxu0
  %v382 = vadd.f32 0.0, %v381
  %v383 = vpop.f32.mrb[0].mxu0
  %384 = vmatprep.mubr.f32.mxu0 0.0
  %385 = vmatmul.mubr.f32.gmra.mrb[0].mxu0 %v238
  %v386 = vpop.f32.mrb[0].mxu0
  %v387 = vadd.f32 0.0, %v386
  %v388 = vpop.f32.mrb[0].mxu0
  %389 = vmatprep.mubr.f32.mxu0 0.0
  %390 = vmatmul.mubr.f32.gmra.mrb[0].mxu0 %v240
  %v391 = vpop.f32.mrb[0].mxu0
  %v392 = vadd.f32 0.0, %v391
  %v393 = vpop.f32.mrb[0].mxu0
  %394 = vmatprep.mubr.f32.mxu0 0.0
  %395 = vmatmul.mubr.f32.gmra.mrb[0].mxu0 %v242
  %v396 = vpop.f32.mrb[0].mxu0
  %v397 = vadd.f32 0.0, %v396
  %v398 = vpop.f32.mrb[0].mxu0
  %399 = vmatprep.mubr.f32.mxu0 0.0
  %400 = vmatmul.mubr.f32.gmra.mrb[0].mxu0 %v244
  %v401 = vpop.f32.mrb[0].mxu0
  %v402 = vadd.f32 0.0, %v401
  %v403 = vpop.f32.mrb[0].mxu0
  %404 = vmatprep.mubr.f32.mxu0 0.0
  %405 = vmatmul.mubr.f32.gmra.mrb[0].mxu0 %v246
  %v406 = vpop.f32.mrb[0].mxu0
  %v407 = vadd.f32 0.0, %v406
  %v408 = vpop.f32.mrb[0].mxu0
  %409 = vmatprep.mubr.f32.mxu0 0.0
  %410 = vmatmul.mubr.f32.gmra.mrb[0].mxu0 %v248
  %v411 = vpop.f32.mrb[0].mxu0
  %v412 = vadd.f32 0.0, %v411
  %v413 = vpop.f32.mrb[0].mxu0
  %414 = vmatprep.mubr.f32.mxu0 0.0
  %415 = vmatmul.mubr.f32.gmra.mrb[0].mxu0 %v250
  %v416 = vpop.f32.mrb[0].mxu0
  %v417 = vadd.f32 0.0, %v416
  %v418 = vpop.f32.mrb[0].mxu0
  %419 = vmatprep.mubr.f32.mxu0 0.0
  %420 = vmatmul.mubr.f32.gmra.mrb[0].mxu0 %v252
  %v421 = vpop.f32.mrb[0].mxu0
  %v422 = vadd.f32 0.0, %v421
  %v423 = vpop.f32.mrb[0].mxu0
  %424 = vmatprep.mubr.f32.mxu0 0.0
  %425 = vmatmul.mubr.f32.gmra.mrb[0].mxu0 %v254
  %v426 = vpop.f32.mrb[0].mxu0
  %v427 = vadd.f32 0.0, %v426
  %v428 = vpop.f32.mrb[0].mxu0
  %429 = vmatprep.mubr.f32.mxu0 0.0
  %430 = vmatmul.mubr.f32.gmra.mrb[0].mxu0 %v256
  %v431 = vpop.f32.mrb[0].mxu0
  %v432 = vadd.f32 0.0, %v431
  %v433 = vpop.f32.mrb[0].mxu0
  %434 = vmatprep.mubr.f32.mxu0 0.0
  %435 = vmatmul.mubr.f32.gmra.mrb[0].mxu0 %v258
  %v436 = vpop.f32.mrb[0].mxu0
  %v437 = vadd.f32 0.0, %v436
  %v438 = vpop.f32.mrb[0].mxu0
  %439 = vmatprep.mubr.f32.mxu0 0.0
  %440 = vmatmul.mubr.f32.gmra.mrb[0].mxu0 %v260
  %v441 = vpop.f32.mrb[0].mxu0
  %v442 = vadd.f32 0.0, %v441
  %v443 = vpop.f32.mrb[0].mxu0
  %444 = vmatprep.mubr.f32.mxu0 0.0
  %445 = vmatmul.mubr.f32.gmra.mrb[0].mxu0 %v262
  %v446 = vpop.f32.mrb[0].mxu0
  %v447 = vadd.f32 0.0, %v446
  %v448 = vpop.f32.mrb[0].mxu0
  %449 = vmatprep.mubr.f32.mxu0 0.0
  %450 = vmatmul.mubr.f32.gmra.mrb[0].mxu0 %v264
  %v451 = vpop.f32.mrb[0].mxu0
  %v452 = vadd.f32 0.0, %v451
  %v453 = vpop.f32.mrb[0].mxu0
  %454 = vmatprep.mubr.f32.mxu0 0.0
  %455 = vmatmul.mubr.f32.gmra.mrb[0].mxu0 %v266
  %v456 = vpop.f32.mrb[0].mxu0
  %v457 = vadd.f32 0.0, %v456
  %v458 = vpop.f32.mrb[0].mxu0
  %459 = vmatprep.mubr.f32.mxu0 0.0
  %460 = vmatmul.mubr.f32.gmra.mrb[0].mxu0 %v268
  %v461 = vpop.f32.mrb[0].mxu0
  %v462 = vadd.f32 0.0, %v461
  %v463 = vpop.f32.mrb[0].mxu0
  %464 = vmatprep.mubr.f32.mxu0 0.0
  %465 = vmatmul.mubr.f32.gmra.mrb[0].mxu0 %v270
  %v466 = vpop.f32.mrb[0].mxu0
  %v467 = vadd.f32 0.0, %v466
  %v468 = vpop.f32.mrb[0].mxu0
  %469 = vmatprep.mubr.f32.mxu0 0.0
  %470 = vmatmul.mubr.f32.gmra.mrb[0].mxu0 %v272
  %v471 = vpop.f32.mrb[0].mxu0
  %v472 = vadd.f32 0.0, %v471
  %v473 = vpop.f32.mrb[0].mxu0
  %474 = vmatprep.mubr.f32.mxu0 0.0
  %475 = vmatmul.mubr.f32.gmra.mrb[0].mxu0 %v274
  %v476 = vpop.f32.mrb[0].mxu0
  %v477 = vadd.f32 0.0, %v476
  %v478 = vpop.f32.mrb[0].mxu0
  %479 = vmatprep.mubr.f32.mxu0 0.0
  %480 = vmatmul.mubr.f32.gmra.mrb[0].mxu0 %v276
  %v481 = vpop.f32.mrb[0].mxu0
  %v482 = vadd.f32 0.0, %v481
  %v483 = vpop.f32.mrb[0].mxu0
  %484 = vmatprep.mubr.f32.mxu0 0.0
  %485 = vmatmul.mubr.f32.gmra.mrb[0].mxu0 %v278
  %v486 = vpop.f32.mrb[0].mxu0
  %v487 = vadd.f32 0.0, %v486
  %v488 = vpop.f32.mrb[0].mxu0
  %489 = vmatprep.mubr.f32.mxu0 0.0
  %490 = vmatmul.mubr.f32.gmra.mrb[0].mxu0 %v280
  %v491 = vpop.f32.mrb[0].mxu0
  %v492 = vadd.f32 0.0, %v491
  %v493 = vpop.f32.mrb[0].mxu0
  %494 = vmatprep.mubr.f32.mxu0 0.0
  %495 = vmatmul.mubr.f32.gmra.mrb[0].mxu0 %v282
  %v496 = vpop.f32.mrb[0].mxu0
  %v497 = vadd.f32 0.0, %v496
  %v498 = vpop.f32.mrb[0].mxu0
  %499 = vmatprep.mubr.f32.mxu0 0.0
  %500 = vmatmul.mubr.f32.gmra.mrb[0].mxu0 %v284
  %v501 = vpop.f32.mrb[0].mxu0
  %v502 = vadd.f32 0.0, %v501
  %v503 = vpop.f32.mrb[0].mxu0
  %504 = vmatprep.mubr.f32.mxu0 0.0
  %505 = vmatmul.mubr.f32.gmra.mrb[0].mxu0 %v286
  %v506 = vpop.f32.mrb[0].mxu0
  %v507 = vadd.f32 0.0, %v506
  %v508 = vpop.f32.mrb[0].mxu0
  %509 = vmatprep.mubr.f32.mxu0 0.0
  %510 = vmatmul.mubr.f32.gmra.mrb[0].mxu0 %v288
  %v511 = vpop.f32.mrb[0].mxu0
  %v512 = vadd.f32 0.0, %v511
  %v513 = vpop.f32.mrb[0].mxu0
  %514 = vdwg.mxu0
  %v516 = vsel %vm225, %v152, 0
  %v518 = vsel %vm225, %v90, 0
  %v520 = vsel %vm225, %v92, 0
  %v522 = vsel %vm225, %v94, 0
  %v524 = vsel %vm225, %v96, 0
  %v526 = vsel %vm225, %v98, 0
  %v528 = vsel %vm225, %v100, 0
  %v530 = vsel %vm225, %v102, 0
  %v533 = vsel %vm225, %v153, 0
  %v535 = vsel %vm225, %v105, 0
  %v537 = vsel %vm225, %v107, 0
  %v539 = vsel %vm225, %v109, 0
  %v541 = vsel %vm225, %v111, 0
  %v543 = vsel %vm225, %v113, 0
  %v545 = vsel %vm225, %v115, 0
  %v547 = vsel %vm225, %v117, 0
  %v550 = vsel %vm225, %v154, 0
  %v552 = vsel %vm225, %v120, 0
  %v554 = vsel %vm225, %v122, 0
  %v556 = vsel %vm225, %v124, 0
  %v558 = vsel %vm225, %v126, 0
  %v560 = vsel %vm225, %v128, 0
  %v562 = vsel %vm225, %v130, 0
  %v564 = vsel %vm225, %v132, 0
  %v567 = vsel %vm225, %v155, 0
  %v569 = vsel %vm225, %v135, 0
  %v571 = vsel %vm225, %v137, 0
  %v573 = vsel %vm225, %v139, 0
  %v575 = vsel %vm225, %v141, 0
  %v577 = vsel %vm225, %v143, 0
  %v579 = vsel %vm225, %v145, 0
  %v581 = vsel %vm225, %v147, 0
  %583 = vmatprep.subr.mxu0 0.0
  %584 = vmatpush1.msra.mxu0 %v52
  %585 = vmatprep.subr.mxu0 0.0
  %586 = vmatpush1.msra.mxu0 0.0
  %587 = vmatprep.subr.mxu0 0.0
  %588 = vmatpush1.msra.mxu0 0.0
  %589 = vmatprep.subr.mxu0 0.0
  %590 = vmatpush1.msra.mxu0 0.0
  %591 = vmatprep.subr.mxu0 0.0
  %592 = vmatpush1.msra.mxu0 0.0
  %593 = vmatprep.subr.mxu0 0.0
  %594 = vmatpush1.msra.mxu0 0.0
  %595 = vmatprep.subr.mxu0 0.0
  %596 = vmatpush1.msra.mxu0 0.0
  %597 = vmatprep.subr.mxu0 0.0
  %598 = vmatpush1.msra.mxu0 0.0
  %599 = vmatprep.subr.mxu0 0.0
  %600 = vmatpush1.msra.mxu0 0.0
  %601 = vmatprep.subr.mxu0 0.0
  %602 = vmatpush1.msra.mxu0 0.0
  %603 = vmatprep.subr.mxu0 0.0
  %604 = vmatpush1.msra.mxu0 0.0
  %605 = vmatprep.subr.mxu0 0.0
  %606 = vmatpush1.msra.mxu0 0.0
  %607 = vmatprep.subr.mxu0 0.0
  %608 = vmatpush1.msra.mxu0 0.0
  %609 = vmatprep.subr.mxu0 0.0
  %610 = vmatpush1.msra.mxu0 0.0
  %611 = vmatprep.subr.mxu0 0.0
  %612 = vmatpush1.msra.mxu0 0.0
  %613 = vmatprep.subr.mxu0 0.0
  %614 = vmatpush1.msra.mxu0 0.0
  %615 = vmatprep.subr.mxu0 0.0
  %616 = vmatpush1.msra.mxu0 0.0
  %617 = vmatprep.subr.mxu0 0.0
  %618 = vmatpush1.msra.mxu0 0.0
  %619 = vmatprep.subr.mxu0 0.0
  %620 = vmatpush1.msra.mxu0 0.0
  %621 = vmatprep.subr.mxu0 0.0
  %622 = vmatpush1.msra.mxu0 0.0
  %623 = vmatprep.subr.mxu0 0.0
  %624 = vmatpush1.msra.mxu0 0.0
  %625 = vmatprep.subr.mxu0 0.0
  %626 = vmatpush1.msra.mxu0 0.0
  %627 = vmatprep.subr.mxu0 0.0
  %628 = vmatpush1.msra.mxu0 0.0
  %629 = vmatprep.subr.mxu0 0.0
  %630 = vmatpush1.msra.mxu0 0.0
  %631 = vmatprep.subr.mxu0 0.0
  %632 = vmatpush1.msra.mxu0 0.0
  %633 = vmatprep.subr.mxu0 0.0
  %634 = vmatpush1.msra.mxu0 0.0
  %635 = vmatprep.subr.mxu0 0.0
  %636 = vmatpush1.msra.mxu0 0.0
  %637 = vmatprep.subr.mxu0 0.0
  %638 = vmatpush1.msra.mxu0 0.0
  %639 = vmatprep.subr.mxu0 0.0
  %640 = vmatpush1.msra.mxu0 0.0
  %641 = vmatprep.subr.mxu0 0.0
  %642 = vmatpush1.msra.mxu0 0.0
  %643 = vmatprep.subr.mxu0 0.0
  %644 = vmatpush1.msra.mxu0 0.0
  %645 = vmatprep.subr.mxu0 0.0
  %646 = vmatpush1.msra.mxu0 0.0
  %647 = vmatprep.mubr.f32.mxu0 0.0
  %648 = vmatmul.mubr.f32.gmra.mrb[0].mxu0 %v516
  %v649 = vpop.f32.mrb[0].mxu0
  %v650 = vadd.f32 %v357, %v649
  %v651 = vpop.f32.mrb[0].mxu0
  %652 = vmatprep.mubr.f32.mxu0 0.0
  %653 = vmatmul.mubr.f32.gmra.mrb[0].mxu0 %v518
  %v654 = vpop.f32.mrb[0].mxu0
  %v655 = vadd.f32 %v362, %v654
  %v656 = vpop.f32.mrb[0].mxu0
  %657 = vmatprep.mubr.f32.mxu0 0.0
  %658 = vmatmul.mubr.f32.gmra.mrb[0].mxu0 %v520
  %v659 = vpop.f32.mrb[0].mxu0
  %v660 = vadd.f32 %v367, %v659
  %v661 = vpop.f32.mrb[0].mxu0
  %662 = vmatprep.mubr.f32.mxu0 0.0
  %663 = vmatmul.mubr.f32.gmra.mrb[0].mxu0 %v522
  %v664 = vpop.f32.mrb[0].mxu0
  %v665 = vadd.f32 %v372, %v664
  %v666 = vpop.f32.mrb[0].mxu0
  %667 = vmatprep.mubr.f32.mxu0 0.0
  %668 = vmatmul.mubr.f32.gmra.mrb[0].mxu0 %v524
  %v669 = vpop.f32.mrb[0].mxu0
  %v670 = vadd.f32 %v377, %v669
  %v671 = vpop.f32.mrb[0].mxu0
  %672 = vmatprep.mubr.f32.mxu0 0.0
  %673 = vmatmul.mubr.f32.gmra.mrb[0].mxu0 %v526
  %v674 = vpop.f32.mrb[0].mxu0
  %v675 = vadd.f32 %v382, %v674
  %v676 = vpop.f32.mrb[0].mxu0
  %677 = vmatprep.mubr.f32.mxu0 0.0
  %678 = vmatmul.mubr.f32.gmra.mrb[0].mxu0 %v528
  %v679 = vpop.f32.mrb[0].mxu0
  %v680 = vadd.f32 %v387, %v679
  %v681 = vpop.f32.mrb[0].mxu0
  %682 = vmatprep.mubr.f32.mxu0 0.0
  %683 = vmatmul.mubr.f32.gmra.mrb[0].mxu0 %v530
  %v684 = vpop.f32.mrb[0].mxu0
  %v685 = vadd.f32 %v392, %v684
  %v686 = vpop.f32.mrb[0].mxu0
  %687 = vmatprep.mubr.f32.mxu0 0.0
  %688 = vmatmul.mubr.f32.gmra.mrb[0].mxu0 %v533
  %v689 = vpop.f32.mrb[0].mxu0
  %v690 = vadd.f32 %v397, %v689
  %v691 = vpop.f32.mrb[0].mxu0
  %692 = vmatprep.mubr.f32.mxu0 0.0
  %693 = vmatmul.mubr.f32.gmra.mrb[0].mxu0 %v535
  %v694 = vpop.f32.mrb[0].mxu0
  %v695 = vadd.f32 %v402, %v694
  %v696 = vpop.f32.mrb[0].mxu0
  %697 = vmatprep.mubr.f32.mxu0 0.0
  %698 = vmatmul.mubr.f32.gmra.mrb[0].mxu0 %v537
  %v699 = vpop.f32.mrb[0].mxu0
  %v700 = vadd.f32 %v407, %v699
  %v701 = vpop.f32.mrb[0].mxu0
  %702 = vmatprep.mubr.f32.mxu0 0.0
  %703 = vmatmul.mubr.f32.gmra.mrb[0].mxu0 %v539
  %v704 = vpop.f32.mrb[0].mxu0
  %v705 = vadd.f32 %v412, %v704
  %v706 = vpop.f32.mrb[0].mxu0
  %707 = vmatprep.mubr.f32.mxu0 0.0
  %708 = vmatmul.mubr.f32.gmra.mrb[0].mxu0 %v541
  %v709 = vpop.f32.mrb[0].mxu0
  %v710 = vadd.f32 %v417, %v709
  %v711 = vpop.f32.mrb[0].mxu0
  %712 = vmatprep.mubr.f32.mxu0 0.0
  %713 = vmatmul.mubr.f32.gmra.mrb[0].mxu0 %v543
  %v714 = vpop.f32.mrb[0].mxu0
  %v715 = vadd.f32 %v422, %v714
  %v716 = vpop.f32.mrb[0].mxu0
  %717 = vmatprep.mubr.f32.mxu0 0.0
  %718 = vmatmul.mubr.f32.gmra.mrb[0].mxu0 %v545
  %v719 = vpop.f32.mrb[0].mxu0
  %v720 = vadd.f32 %v427, %v719
  %v721 = vpop.f32.mrb[0].mxu0
  %722 = vmatprep.mubr.f32.mxu0 0.0
  %723 = vmatmul.mubr.f32.gmra.mrb[0].mxu0 %v547
  %v724 = vpop.f32.mrb[0].mxu0
  %v725 = vadd.f32 %v432, %v724
  %v726 = vpop.f32.mrb[0].mxu0
  %727 = vmatprep.mubr.f32.mxu0 0.0
  %728 = vmatmul.mubr.f32.gmra.mrb[0].mxu0 %v550
  %v729 = vpop.f32.mrb[0].mxu0
  %v730 = vadd.f32 %v437, %v729
  %v731 = vpop.f32.mrb[0].mxu0
  %732 = vmatprep.mubr.f32.mxu0 0.0
  %733 = vmatmul.mubr.f32.gmra.mrb[0].mxu0 %v552
  %v734 = vpop.f32.mrb[0].mxu0
  %v735 = vadd.f32 %v442, %v734
  %v736 = vpop.f32.mrb[0].mxu0
  %737 = vmatprep.mubr.f32.mxu0 0.0
  %738 = vmatmul.mubr.f32.gmra.mrb[0].mxu0 %v554
  %v739 = vpop.f32.mrb[0].mxu0
  %v740 = vadd.f32 %v447, %v739
  %v741 = vpop.f32.mrb[0].mxu0
  %742 = vmatprep.mubr.f32.mxu0 0.0
  %743 = vmatmul.mubr.f32.gmra.mrb[0].mxu0 %v556
  %v744 = vpop.f32.mrb[0].mxu0
  %v745 = vadd.f32 %v452, %v744
  %v746 = vpop.f32.mrb[0].mxu0
  %747 = vmatprep.mubr.f32.mxu0 0.0
  %748 = vmatmul.mubr.f32.gmra.mrb[0].mxu0 %v558
  %v749 = vpop.f32.mrb[0].mxu0
  %v750 = vadd.f32 %v457, %v749
  %v751 = vpop.f32.mrb[0].mxu0
  %752 = vmatprep.mubr.f32.mxu0 0.0
  %753 = vmatmul.mubr.f32.gmra.mrb[0].mxu0 %v560
  %v754 = vpop.f32.mrb[0].mxu0
  %v755 = vadd.f32 %v462, %v754
  %v756 = vpop.f32.mrb[0].mxu0
  %757 = vmatprep.mubr.f32.mxu0 0.0
  %758 = vmatmul.mubr.f32.gmra.mrb[0].mxu0 %v562
  %v759 = vpop.f32.mrb[0].mxu0
  %v760 = vadd.f32 %v467, %v759
  %v761 = vpop.f32.mrb[0].mxu0
  %762 = vmatprep.mubr.f32.mxu0 0.0
  %763 = vmatmul.mubr.f32.gmra.mrb[0].mxu0 %v564
  %v764 = vpop.f32.mrb[0].mxu0
  %v765 = vadd.f32 %v472, %v764
  %v766 = vpop.f32.mrb[0].mxu0
  %767 = vmatprep.mubr.f32.mxu0 0.0
  %768 = vmatmul.mubr.f32.gmra.mrb[0].mxu0 %v567
  %v769 = vpop.f32.mrb[0].mxu0
  %v770 = vadd.f32 %v477, %v769
  %v771 = vpop.f32.mrb[0].mxu0
  %772 = vmatprep.mubr.f32.mxu0 0.0
  %773 = vmatmul.mubr.f32.gmra.mrb[0].mxu0 %v569
  %v774 = vpop.f32.mrb[0].mxu0
  %v775 = vadd.f32 %v482, %v774
  %v776 = vpop.f32.mrb[0].mxu0
  %777 = vmatprep.mubr.f32.mxu0 0.0
  %778 = vmatmul.mubr.f32.gmra.mrb[0].mxu0 %v571
  %v779 = vpop.f32.mrb[0].mxu0
  %v780 = vadd.f32 %v487, %v779
  %v781 = vpop.f32.mrb[0].mxu0
  %782 = vmatprep.mubr.f32.mxu0 0.0
  %783 = vmatmul.mubr.f32.gmra.mrb[0].mxu0 %v573
  %v784 = vpop.f32.mrb[0].mxu0
  %v785 = vadd.f32 %v492, %v784
  %v786 = vpop.f32.mrb[0].mxu0
  %787 = vmatprep.mubr.f32.mxu0 0.0
  %788 = vmatmul.mubr.f32.gmra.mrb[0].mxu0 %v575
  %v789 = vpop.f32.mrb[0].mxu0
  %v790 = vadd.f32 %v497, %v789
  %v791 = vpop.f32.mrb[0].mxu0
  %792 = vmatprep.mubr.f32.mxu0 0.0
  %793 = vmatmul.mubr.f32.gmra.mrb[0].mxu0 %v577
  %v794 = vpop.f32.mrb[0].mxu0
  %v795 = vadd.f32 %v502, %v794
  %v796 = vpop.f32.mrb[0].mxu0
  %797 = vmatprep.mubr.f32.mxu0 0.0
  %798 = vmatmul.mubr.f32.gmra.mrb[0].mxu0 %v579
  %v799 = vpop.f32.mrb[0].mxu0
  %v800 = vadd.f32 %v507, %v799
  %v801 = vpop.f32.mrb[0].mxu0
  %802 = vmatprep.mubr.f32.mxu0 0.0
  %803 = vmatmul.mubr.f32.gmra.mrb[0].mxu0 %v581
  %v804 = vpop.f32.mrb[0].mxu0
  %v805 = vadd.f32 %v512, %v804
  %v806 = vpop.f32.mrb[0].mxu0
  %807 = vdwg.mxu0
  %v808 = vsel %vm225, %v159, 0
  %v810 = vsel %vm225, %v161, 0
  %v812 = vsel %vm225, %v163, 0
  %v814 = vsel %vm225, %v165, 0
  %v816 = vsel %vm225, %v167, 0
  %v818 = vsel %vm225, %v169, 0
  %v820 = vsel %vm225, %v171, 0
  %v823 = vsel %vm225, %v221, 0
  %v825 = vsel %vm225, %v174, 0
  %v827 = vsel %vm225, %v176, 0
  %v829 = vsel %vm225, %v178, 0
  %v831 = vsel %vm225, %v180, 0
  %v833 = vsel %vm225, %v182, 0
  %v835 = vsel %vm225, %v184, 0
  %v837 = vsel %vm225, %v186, 0
  %v840 = vsel %vm225, %v222, 0
  %v842 = vsel %vm225, %v189, 0
  %v844 = vsel %vm225, %v191, 0
  %v846 = vsel %vm225, %v193, 0
  %v848 = vsel %vm225, %v195, 0
  %v850 = vsel %vm225, %v197, 0
  %v852 = vsel %vm225, %v199, 0
  %v854 = vsel %vm225, %v201, 0
  %v857 = vsel %vm225, %v223, 0
  %v859 = vsel %vm225, %v204, 0
  %v861 = vsel %vm225, %v206, 0
  %v863 = vsel %vm225, %v208, 0
  %v865 = vsel %vm225, %v210, 0
  %v867 = vsel %vm225, %v212, 0
  %v869 = vsel %vm225, %v214, 0
  %v871 = vsel %vm225, %v216, 0
  %v874 = vsel %vm225, %v224, 0
  %876 = vmatprep.subr.mxu0 0.0
  %877 = vmatpush1.msra.mxu0 %v54
  %878 = vmatprep.subr.mxu0 0.0
  %879 = vmatpush1.msra.mxu0 0.0
  %880 = vmatprep.subr.mxu0 0.0
  %881 = vmatpush1.msra.mxu0 0.0
  %882 = vmatprep.subr.mxu0 0.0
  %883 = vmatpush1.msra.mxu0 0.0
  %884 = vmatprep.subr.mxu0 0.0
  %885 = vmatpush1.msra.mxu0 0.0
  %886 = vmatprep.subr.mxu0 0.0
  %887 = vmatpush1.msra.mxu0 0.0
  %888 = vmatprep.subr.mxu0 0.0
  %889 = vmatpush1.msra.mxu0 0.0
  %890 = vmatprep.subr.mxu0 0.0
  %891 = vmatpush1.msra.mxu0 0.0
  %892 = vmatprep.subr.mxu0 0.0
  %893 = vmatpush1.msra.mxu0 0.0
  %894 = vmatprep.subr.mxu0 0.0
  %895 = vmatpush1.msra.mxu0 0.0
  %896 = vmatprep.subr.mxu0 0.0
  %897 = vmatpush1.msra.mxu0 0.0
  %898 = vmatprep.subr.mxu0 0.0
  %899 = vmatpush1.msra.mxu0 0.0
  %900 = vmatprep.subr.mxu0 0.0
  %901 = vmatpush1.msra.mxu0 0.0
  %902 = vmatprep.subr.mxu0 0.0
  %903 = vmatpush1.msra.mxu0 0.0
  %904 = vmatprep.subr.mxu0 0.0
  %905 = vmatpush1.msra.mxu0 0.0
  %906 = vmatprep.subr.mxu0 0.0
  %907 = vmatpush1.msra.mxu0 0.0
  %908 = vmatprep.subr.mxu0 0.0
  %909 = vmatpush1.msra.mxu0 0.0
  %910 = vmatprep.subr.mxu0 0.0
  %911 = vmatpush1.msra.mxu0 0.0
  %912 = vmatprep.subr.mxu0 0.0
  %913 = vmatpush1.msra.mxu0 0.0
  %914 = vmatprep.subr.mxu0 0.0
  %915 = vmatpush1.msra.mxu0 0.0
  %916 = vmatprep.subr.mxu0 0.0
  %917 = vmatpush1.msra.mxu0 0.0
  %918 = vmatprep.subr.mxu0 0.0
  %919 = vmatpush1.msra.mxu0 0.0
  %920 = vmatprep.subr.mxu0 0.0
  %921 = vmatpush1.msra.mxu0 0.0
  %922 = vmatprep.subr.mxu0 0.0
  %923 = vmatpush1.msra.mxu0 0.0
  %924 = vmatprep.subr.mxu0 0.0
  %925 = vmatpush1.msra.mxu0 0.0
  %926 = vmatprep.subr.mxu0 0.0
  %927 = vmatpush1.msra.mxu0 0.0
  %928 = vmatprep.subr.mxu0 0.0
  %929 = vmatpush1.msra.mxu0 0.0
  %930 = vmatprep.subr.mxu0 0.0
  %931 = vmatpush1.msra.mxu0 0.0
  %932 = vmatprep.subr.mxu0 0.0
  %933 = vmatpush1.msra.mxu0 0.0
  %934 = vmatprep.subr.mxu0 0.0
  %935 = vmatpush1.msra.mxu0 0.0
  %936 = vmatprep.subr.mxu0 0.0
  %937 = vmatpush1.msra.mxu0 0.0
  %938 = vmatprep.subr.mxu0 0.0
  %939 = vmatpush1.msra.mxu0 0.0
  %940 = vmatprep.mubr.f32.mxu0 0.0
  %941 = vmatmul.mubr.f32.gmra.mrb[0].mxu0 %v808
  %v942 = vpop.f32.mrb[0].mxu0
  %v943 = vadd.f32 0.0, %v942
  %v944 = vpop.f32.mrb[0].mxu0
  %945 = vmatprep.mubr.f32.mxu0 0.0
  %946 = vmatmul.mubr.f32.gmra.mrb[0].mxu0 %v810
  %v947 = vpop.f32.mrb[0].mxu0
  %v948 = vadd.f32 0.0, %v947
  %v949 = vpop.f32.mrb[0].mxu0
  %950 = vmatprep.mubr.f32.mxu0 0.0
  %951 = vmatmul.mubr.f32.gmra.mrb[0].mxu0 %v812
  %v952 = vpop.f32.mrb[0].mxu0
  %v953 = vadd.f32 0.0, %v952
  %v954 = vpop.f32.mrb[0].mxu0
  %955 = vmatprep.mubr.f32.mxu0 0.0
  %956 = vmatmul.mubr.f32.gmra.mrb[0].mxu0 %v814
  %v957 = vpop.f32.mrb[0].mxu0
  %v958 = vadd.f32 0.0, %v957
  %v959 = vpop.f32.mrb[0].mxu0
  %960 = vmatprep.mubr.f32.mxu0 0.0
  %961 = vmatmul.mubr.f32.gmra.mrb[0].mxu0 %v816
  %v962 = vpop.f32.mrb[0].mxu0
  %v963 = vadd.f32 0.0, %v962
  %v964 = vpop.f32.mrb[0].mxu0
  %965 = vmatprep.mubr.f32.mxu0 0.0
  %966 = vmatmul.mubr.f32.gmra.mrb[0].mxu0 %v818
  %v967 = vpop.f32.mrb[0].mxu0
  %v968 = vadd.f32 0.0, %v967
  %v969 = vpop.f32.mrb[0].mxu0
  %970 = vmatprep.mubr.f32.mxu0 0.0
  %971 = vmatmul.mubr.f32.gmra.mrb[0].mxu0 %v820
  %v972 = vpop.f32.mrb[0].mxu0
  %v973 = vadd.f32 0.0, %v972
  %v974 = vpop.f32.mrb[0].mxu0
  %975 = vmatprep.mubr.f32.mxu0 0.0
  %976 = vmatmul.mubr.f32.gmra.mrb[0].mxu0 %v823
  %v977 = vpop.f32.mrb[0].mxu0
  %v978 = vadd.f32 0.0, %v977
  %v979 = vpop.f32.mrb[0].mxu0
  %980 = vmatprep.mubr.f32.mxu0 0.0
  %981 = vmatmul.mubr.f32.gmra.mrb[0].mxu0 %v825
  %v982 = vpop.f32.mrb[0].mxu0
  %v983 = vadd.f32 0.0, %v982
  %v984 = vpop.f32.mrb[0].mxu0
  %985 = vmatprep.mubr.f32.mxu0 0.0
  %986 = vmatmul.mubr.f32.gmra.mrb[0].mxu0 %v827
  %v987 = vpop.f32.mrb[0].mxu0
  %v988 = vadd.f32 0.0, %v987
  %v989 = vpop.f32.mrb[0].mxu0
  %990 = vmatprep.mubr.f32.mxu0 0.0
  %991 = vmatmul.mubr.f32.gmra.mrb[0].mxu0 %v829
  %v992 = vpop.f32.mrb[0].mxu0
  %v993 = vadd.f32 0.0, %v992
  %v994 = vpop.f32.mrb[0].mxu0
  %995 = vmatprep.mubr.f32.mxu0 0.0
  %996 = vmatmul.mubr.f32.gmra.mrb[0].mxu0 %v831
  %v997 = vpop.f32.mrb[0].mxu0
  %v998 = vadd.f32 0.0, %v997
  %v999 = vpop.f32.mrb[0].mxu0
  %1000 = vmatprep.mubr.f32.mxu0 0.0
  %1001 = vmatmul.mubr.f32.gmra.mrb[0].mxu0 %v833
  %v1002 = vpop.f32.mrb[0].mxu0
  %v1003 = vadd.f32 0.0, %v1002
  %v1004 = vpop.f32.mrb[0].mxu0
  %1005 = vmatprep.mubr.f32.mxu0 0.0
  %1006 = vmatmul.mubr.f32.gmra.mrb[0].mxu0 %v835
  %v1007 = vpop.f32.mrb[0].mxu0
  %v1008 = vadd.f32 0.0, %v1007
  %v1009 = vpop.f32.mrb[0].mxu0
  %1010 = vmatprep.mubr.f32.mxu0 0.0
  %1011 = vmatmul.mubr.f32.gmra.mrb[0].mxu0 %v837
  %v1012 = vpop.f32.mrb[0].mxu0
  %v1013 = vadd.f32 0.0, %v1012
  %v1014 = vpop.f32.mrb[0].mxu0
  %1015 = vmatprep.mubr.f32.mxu0 0.0
  %1016 = vmatmul.mubr.f32.gmra.mrb[0].mxu0 %v840
  %v1017 = vpop.f32.mrb[0].mxu0
  %v1018 = vadd.f32 0.0, %v1017
  %v1019 = vpop.f32.mrb[0].mxu0
  %1020 = vmatprep.mubr.f32.mxu0 0.0
  %1021 = vmatmul.mubr.f32.gmra.mrb[0].mxu0 %v842
  %v1022 = vpop.f32.mrb[0].mxu0
  %v1023 = vadd.f32 0.0, %v1022
  %v1024 = vpop.f32.mrb[0].mxu0
  %1025 = vmatprep.mubr.f32.mxu0 0.0
  %1026 = vmatmul.mubr.f32.gmra.mrb[0].mxu0 %v844
  %v1027 = vpop.f32.mrb[0].mxu0
  %v1028 = vadd.f32 0.0, %v1027
  %v1029 = vpop.f32.mrb[0].mxu0
  %1030 = vmatprep.mubr.f32.mxu0 0.0
  %1031 = vmatmul.mubr.f32.gmra.mrb[0].mxu0 %v846
  %v1032 = vpop.f32.mrb[0].mxu0
  %v1033 = vadd.f32 0.0, %v1032
  %v1034 = vpop.f32.mrb[0].mxu0
  %1035 = vmatprep.mubr.f32.mxu0 0.0
  %1036 = vmatmul.mubr.f32.gmra.mrb[0].mxu0 %v848
  %v1037 = vpop.f32.mrb[0].mxu0
  %v1038 = vadd.f32 0.0, %v1037
  %v1039 = vpop.f32.mrb[0].mxu0
  %1040 = vmatprep.mubr.f32.mxu0 0.0
  %1041 = vmatmul.mubr.f32.gmra.mrb[0].mxu0 %v850
  %v1042 = vpop.f32.mrb[0].mxu0
  %v1043 = vadd.f32 0.0, %v1042
  %v1044 = vpop.f32.mrb[0].mxu0
  %1045 = vmatprep.mubr.f32.mxu0 0.0
  %1046 = vmatmul.mubr.f32.gmra.mrb[0].mxu0 %v852
  %v1047 = vpop.f32.mrb[0].mxu0
  %v1048 = vadd.f32 0.0, %v1047
  %v1049 = vpop.f32.mrb[0].mxu0
  %1050 = vmatprep.mubr.f32.mxu0 0.0
  %1051 = vmatmul.mubr.f32.gmra.mrb[0].mxu0 %v854
  %v1052 = vpop.f32.mrb[0].mxu0
  %v1053 = vadd.f32 0.0, %v1052
  %v1054 = vpop.f32.mrb[0].mxu0
  %1055 = vmatprep.mubr.f32.mxu0 0.0
  %1056 = vmatmul.mubr.f32.gmra.mrb[0].mxu0 %v857
  %v1057 = vpop.f32.mrb[0].mxu0
  %v1058 = vadd.f32 0.0, %v1057
  %v1059 = vpop.f32.mrb[0].mxu0
  %1060 = vmatprep.mubr.f32.mxu0 0.0
  %1061 = vmatmul.mubr.f32.gmra.mrb[0].mxu0 %v859
  %v1062 = vpop.f32.mrb[0].mxu0
  %v1063 = vadd.f32 0.0, %v1062
  %v1064 = vpop.f32.mrb[0].mxu0
  %1065 = vmatprep.mubr.f32.mxu0 0.0
  %1066 = vmatmul.mubr.f32.gmra.mrb[0].mxu0 %v861
  %v1067 = vpop.f32.mrb[0].mxu0
  %v1068 = vadd.f32 0.0, %v1067
  %v1069 = vpop.f32.mrb[0].mxu0
  %1070 = vmatprep.mubr.f32.mxu0 0.0
  %1071 = vmatmul.mubr.f32.gmra.mrb[0].mxu0 %v863
  %v1072 = vpop.f32.mrb[0].mxu0
  %v1073 = vadd.f32 0.0, %v1072
  %v1074 = vpop.f32.mrb[0].mxu0
  %1075 = vmatprep.mubr.f32.mxu0 0.0
  %1076 = vmatmul.mubr.f32.gmra.mrb[0].mxu0 %v865
  %v1077 = vpop.f32.mrb[0].mxu0
  %v1078 = vadd.f32 0.0, %v1077
  %v1079 = vpop.f32.mrb[0].mxu0
  %1080 = vmatprep.mubr.f32.mxu0 0.0
  %1081 = vmatmul.mubr.f32.gmra.mrb[0].mxu0 %v867
  %v1082 = vpop.f32.mrb[0].mxu0
  %v1083 = vadd.f32 0.0, %v1082
  %v1084 = vpop.f32.mrb[0].mxu0
  %1085 = vmatprep.mubr.f32.mxu0 0.0
  %1086 = vmatmul.mubr.f32.gmra.mrb[0].mxu0 %v869
  %v1087 = vpop.f32.mrb[0].mxu0
  %v1088 = vadd.f32 0.0, %v1087
  %v1089 = vpop.f32.mrb[0].mxu0
  %1090 = vmatprep.mubr.f32.mxu0 0.0
  %1091 = vmatmul.mubr.f32.gmra.mrb[0].mxu0 %v871
  %v1092 = vpop.f32.mrb[0].mxu0
  %v1093 = vadd.f32 0.0, %v1092
  %v1094 = vpop.f32.mrb[0].mxu0
  %1095 = vmatprep.mubr.f32.mxu0 0.0
  %1096 = vmatmul.mubr.f32.gmra.mrb[0].mxu0 %v874
  %v1097 = vpop.f32.mrb[0].mxu0
  %v1098 = vadd.f32 0.0, %v1097
  %v1099 = vpop.f32.mrb[0].mxu0
  %1100 = vdwg.mxu0
  %v1101 = vadd.f32 %v650, %v943
  %v1102 = vadd.f32 %v655, %v948
  %v1103 = vadd.f32 %v660, %v953
  %v1104 = vadd.f32 %v665, %v958
  %v1105 = vadd.f32 %v670, %v963
  %v1106 = vadd.f32 %v675, %v968
  %v1107 = vadd.f32 %v680, %v973
  %v1108 = vadd.f32 %v685, %v978
  %v1109 = vadd.f32 %v690, %v983
  %v1110 = vadd.f32 %v695, %v988
  %v1111 = vadd.f32 %v700, %v993
  %v1112 = vadd.f32 %v705, %v998
  %v1113 = vadd.f32 %v710, %v1003
  %v1114 = vadd.f32 %v715, %v1008
  %v1115 = vadd.f32 %v720, %v1013
  %v1116 = vadd.f32 %v725, %v1018
  %v1117 = vadd.f32 %v730, %v1023
  %v1118 = vadd.f32 %v735, %v1028
  %v1119 = vadd.f32 %v740, %v1033
  %v1120 = vadd.f32 %v745, %v1038
  %v1121 = vadd.f32 %v750, %v1043
  %v1122 = vadd.f32 %v755, %v1048
  %v1123 = vadd.f32 %v760, %v1053
  %v1124 = vadd.f32 %v765, %v1058
  %v1125 = vadd.f32 %v770, %v1063
  %v1126 = vadd.f32 %v775, %v1068
  %v1127 = vadd.f32 %v780, %v1073
  %v1128 = vadd.f32 %v785, %v1078
  %v1129 = vadd.f32 %v790, %v1083
  %v1130 = vadd.f32 %v795, %v1088
  %v1131 = vadd.f32 %v800, %v1093
  %v1132 = vadd.f32 %v805, %v1098
  %v1133 = vld [vmem:[%s2] sm:$0x3]
  %vm1134 = vcmask 261120
  %v1135 = vsel %vm1134, %v1101, 0.0
  %v1136 = vsel %vm1134, %v1102, 0.0
  %v1137 = vadd.f32 %v1135, %v1136
  %v1138 = vsel %vm1134, %v1103, 0.0
  %v1139 = vadd.f32 %v1137, %v1138
  %v1140 = vsel %vm1134, %v1104, 0.0
  %v1141 = vadd.f32 %v1139, %v1140
  %v1142 = vsel %vm1134, %v1105, 0.0
  %v1143 = vadd.f32 %v1141, %v1142
  %v1144 = vsel %vm1134, %v1106, 0.0
  %v1145 = vadd.f32 %v1143, %v1144
  %v1146 = vsel %vm1134, %v1107, 0.0
  %v1147 = vadd.f32 %v1145, %v1146
  %v1148 = vsel %vm1134, %v1108, 0.0
  %v1149 = vadd.f32 %v1147, %v1148
  %v1150 = vsel %vm1134, %v1109, 0.0
  %v1151 = vadd.f32 %v1149, %v1150
  %v1152 = vsel %vm1134, %v1110, 0.0
  %v1153 = vadd.f32 %v1151, %v1152
  %v1154 = vsel %vm1134, %v1111, 0.0
  %v1155 = vadd.f32 %v1153, %v1154
  %v1156 = vsel %vm1134, %v1112, 0.0
  %v1157 = vadd.f32 %v1155, %v1156
  %v1158 = vsel %vm1134, %v1113, 0.0
  %v1159 = vadd.f32 %v1157, %v1158
  %v1160 = vsel %vm1134, %v1114, 0.0
  %v1161 = vadd.f32 %v1159, %v1160
  %v1162 = vsel %vm1134, %v1115, 0.0
  %v1163 = vadd.f32 %v1161, %v1162
  %v1164 = vsel %vm1134, %v1116, 0.0
  %v1165 = vadd.f32 %v1163, %v1164
  %v1166 = vsel %vm1134, %v1117, 0.0
  %v1167 = vadd.f32 %v1165, %v1166
  %v1168 = vsel %vm1134, %v1118, 0.0
  %v1169 = vadd.f32 %v1167, %v1168
  %v1170 = vsel %vm1134, %v1119, 0.0
  %v1171 = vadd.f32 %v1169, %v1170
  %v1172 = vsel %vm1134, %v1120, 0.0
  %v1173 = vadd.f32 %v1171, %v1172
  %v1174 = vsel %vm1134, %v1121, 0.0
  %v1175 = vadd.f32 %v1173, %v1174
  %v1176 = vsel %vm1134, %v1122, 0.0
  %v1177 = vadd.f32 %v1175, %v1176
  %v1178 = vsel %vm1134, %v1123, 0.0
  %v1179 = vadd.f32 %v1177, %v1178
  %v1180 = vsel %vm1134, %v1124, 0.0
  %v1181 = vadd.f32 %v1179, %v1180
  %v1182 = vsel %vm1134, %v1125, 0.0
  %v1183 = vadd.f32 %v1181, %v1182
  %v1184 = vsel %vm1134, %v1126, 0.0
  %v1185 = vadd.f32 %v1183, %v1184
  %v1186 = vsel %vm1134, %v1127, 0.0
  %v1187 = vadd.f32 %v1185, %v1186
  %v1188 = vsel %vm1134, %v1128, 0.0
  %v1189 = vadd.f32 %v1187, %v1188
  %v1190 = vsel %vm1134, %v1129, 0.0
  %v1191 = vadd.f32 %v1189, %v1190
  %v1192 = vsel %vm1134, %v1130, 0.0
  %v1193 = vadd.f32 %v1191, %v1192
  %v1194 = vsel %vm1134, %v1131, 0.0
  %v1195 = vadd.f32 %v1193, %v1194
  %v1196 = vsel %vm1134, %v1132, 0.0
  %v1197 = vadd.f32 %v1195, %v1196
  %v1198 = vrot.slane %v1197, 4
  %v1199 = vadd.f32 %v1197, %v1198
  %v1200 = vrot.slane %v1199, 2
  %v1201 = vadd.f32 %v1199, %v1200
  %v1202 = vrot.slane %v1201, 1
  %v1203 = vadd.f32 %v1201, %v1202
  %v1204 = vmul.f32 %v1203, 0.00390625
  %v1205 = vsub.f32 %v1101, %v1204
  %v1206 = vsub.f32 %v1102, %v1204
  %v1207 = vsub.f32 %v1103, %v1204
  %v1208 = vsub.f32 %v1104, %v1204
  %v1209 = vsub.f32 %v1105, %v1204
  %v1210 = vsub.f32 %v1106, %v1204
  %v1211 = vsub.f32 %v1107, %v1204
  %v1212 = vsub.f32 %v1108, %v1204
  %v1213 = vsub.f32 %v1109, %v1204
  %v1214 = vsub.f32 %v1110, %v1204
  %v1215 = vsub.f32 %v1111, %v1204
  %v1216 = vsub.f32 %v1112, %v1204
  %v1217 = vsub.f32 %v1113, %v1204
  %v1218 = vsub.f32 %v1114, %v1204
  %v1219 = vsub.f32 %v1115, %v1204
  %v1220 = vsub.f32 %v1116, %v1204
  %v1221 = vsub.f32 %v1117, %v1204
  %v1222 = vsub.f32 %v1118, %v1204
  %v1223 = vsub.f32 %v1119, %v1204
  %v1224 = vsub.f32 %v1120, %v1204
  %v1225 = vsub.f32 %v1121, %v1204
  %v1226 = vsub.f32 %v1122, %v1204
  %v1227 = vsub.f32 %v1123, %v1204
  %v1228 = vsub.f32 %v1124, %v1204
  %v1229 = vsub.f32 %v1125, %v1204
  %v1230 = vsub.f32 %v1126, %v1204
  %v1231 = vsub.f32 %v1127, %v1204
  %v1232 = vsub.f32 %v1128, %v1204
  %v1233 = vsub.f32 %v1129, %v1204
  %v1234 = vsub.f32 %v1130, %v1204
  %v1235 = vsub.f32 %v1131, %v1204
  %v1236 = vsub.f32 %v1132, %v1204
  %v1237 = vmul.f32 %v1205, %v1205
  %v1238 = vmul.f32 %v1206, %v1206
  %v1239 = vmul.f32 %v1207, %v1207
  %v1240 = vmul.f32 %v1208, %v1208
  %v1241 = vmul.f32 %v1209, %v1209
  %v1242 = vmul.f32 %v1210, %v1210
  %v1243 = vmul.f32 %v1211, %v1211
  %v1244 = vmul.f32 %v1212, %v1212
  %v1245 = vmul.f32 %v1213, %v1213
  %v1246 = vmul.f32 %v1214, %v1214
  %v1247 = vmul.f32 %v1215, %v1215
  %v1248 = vmul.f32 %v1216, %v1216
  %v1249 = vmul.f32 %v1217, %v1217
  %v1250 = vmul.f32 %v1218, %v1218
  %v1251 = vmul.f32 %v1219, %v1219
  %v1252 = vmul.f32 %v1220, %v1220
  %v1253 = vmul.f32 %v1221, %v1221
  %v1254 = vmul.f32 %v1222, %v1222
  %v1255 = vmul.f32 %v1223, %v1223
  %v1256 = vmul.f32 %v1224, %v1224
  %v1257 = vmul.f32 %v1225, %v1225
  %v1258 = vmul.f32 %v1226, %v1226
  %v1259 = vmul.f32 %v1227, %v1227
  %v1260 = vmul.f32 %v1228, %v1228
  %v1261 = vmul.f32 %v1229, %v1229
  %v1262 = vmul.f32 %v1230, %v1230
  %v1263 = vmul.f32 %v1231, %v1231
  %v1264 = vmul.f32 %v1232, %v1232
  %v1265 = vmul.f32 %v1233, %v1233
  %v1266 = vmul.f32 %v1234, %v1234
  %v1267 = vmul.f32 %v1235, %v1235
  %v1268 = vmul.f32 %v1236, %v1236
  %v1269 = vsel %vm1134, %v1237, 0.0
  %v1270 = vsel %vm1134, %v1238, 0.0
  %v1271 = vadd.f32 %v1269, %v1270
  %v1272 = vsel %vm1134, %v1239, 0.0
  %v1273 = vadd.f32 %v1271, %v1272
  %v1274 = vsel %vm1134, %v1240, 0.0
  %v1275 = vadd.f32 %v1273, %v1274
  %v1276 = vsel %vm1134, %v1241, 0.0
  %v1277 = vadd.f32 %v1275, %v1276
  %v1278 = vsel %vm1134, %v1242, 0.0
  %v1279 = vadd.f32 %v1277, %v1278
  %v1280 = vsel %vm1134, %v1243, 0.0
  %v1281 = vadd.f32 %v1279, %v1280
  %v1282 = vsel %vm1134, %v1244, 0.0
  %v1283 = vadd.f32 %v1281, %v1282
  %v1284 = vsel %vm1134, %v1245, 0.0
  %v1285 = vadd.f32 %v1283, %v1284
  %v1286 = vsel %vm1134, %v1246, 0.0
  %v1287 = vadd.f32 %v1285, %v1286
  %v1288 = vsel %vm1134, %v1247, 0.0
  %v1289 = vadd.f32 %v1287, %v1288
  %v1290 = vsel %vm1134, %v1248, 0.0
  %v1291 = vadd.f32 %v1289, %v1290
  %v1292 = vsel %vm1134, %v1249, 0.0
  %v1293 = vadd.f32 %v1291, %v1292
  %v1294 = vsel %vm1134, %v1250, 0.0
  %v1295 = vadd.f32 %v1293, %v1294
  %v1296 = vsel %vm1134, %v1251, 0.0
  %v1297 = vadd.f32 %v1295, %v1296
  %v1298 = vsel %vm1134, %v1252, 0.0
  %v1299 = vadd.f32 %v1297, %v1298
  %v1300 = vsel %vm1134, %v1253, 0.0
  %v1301 = vadd.f32 %v1299, %v1300
  %v1302 = vsel %vm1134, %v1254, 0.0
  %v1303 = vadd.f32 %v1301, %v1302
  %v1304 = vsel %vm1134, %v1255, 0.0
  %v1305 = vadd.f32 %v1303, %v1304
  %v1306 = vsel %vm1134, %v1256, 0.0
  %v1307 = vadd.f32 %v1305, %v1306
  %v1308 = vsel %vm1134, %v1257, 0.0
  %v1309 = vadd.f32 %v1307, %v1308
  %v1310 = vsel %vm1134, %v1258, 0.0
  %v1311 = vadd.f32 %v1309, %v1310
  %v1312 = vsel %vm1134, %v1259, 0.0
  %v1313 = vadd.f32 %v1311, %v1312
  %v1314 = vsel %vm1134, %v1260, 0.0
  %v1315 = vadd.f32 %v1313, %v1314
  %v1316 = vsel %vm1134, %v1261, 0.0
  %v1317 = vadd.f32 %v1315, %v1316
  %v1318 = vsel %vm1134, %v1262, 0.0
  %v1319 = vadd.f32 %v1317, %v1318
  %v1320 = vsel %vm1134, %v1263, 0.0
  %v1321 = vadd.f32 %v1319, %v1320
  %v1322 = vsel %vm1134, %v1264, 0.0
  %v1323 = vadd.f32 %v1321, %v1322
  %v1324 = vsel %vm1134, %v1265, 0.0
  %v1325 = vadd.f32 %v1323, %v1324
  %v1326 = vsel %vm1134, %v1266, 0.0
  %v1327 = vadd.f32 %v1325, %v1326
  %v1328 = vsel %vm1134, %v1267, 0.0
  %v1329 = vadd.f32 %v1327, %v1328
  %v1330 = vsel %vm1134, %v1268, 0.0
  %v1331 = vadd.f32 %v1329, %v1330
  %v1332 = vrot.slane %v1331, 4
  %v1333 = vadd.f32 %v1331, %v1332
  %v1334 = vrot.slane %v1333, 2
  %v1335 = vadd.f32 %v1333, %v1334
  %v1336 = vrot.slane %v1335, 1
  %v1337 = vadd.f32 %v1335, %v1336
  %v1338 = vmul.f32 %v1337, 0.00390625
  %v1339 = vadd.f32 %v1338, 1e-05
  %v1340 = vrsqrt.pop %v1339
  %v1341 = vmul.f32 %v1133, %v1340
  %v1342 = vmul.f32 %v1204, %v1341
  %v1344 = vrot.slane %v1342, 7
  %v1346 = vsub.f32 %v1133, %v1344
  %v1347 = vlaneseq
  %v1348 = vshrl.u32 %v1347, 7
  %v1349 = vsub.s32 0, %v1348
  %v1350 = vrot.slane %v1341, %v1349
  %v1351 = vmul.f32 %v1101, %v1350
  %v1352 = vmul.f32 %v1102, %v1350
  %v1353 = vmul.f32 %v1103, %v1350
  %v1354 = vmul.f32 %v1104, %v1350
  %v1355 = vmul.f32 %v1105, %v1350
  %v1356 = vmul.f32 %v1106, %v1350
  %v1357 = vmul.f32 %v1107, %v1350
  %v1358 = vmul.f32 %v1108, %v1350
  %v1359 = vmul.f32 %v1109, %v1350
  %v1360 = vmul.f32 %v1110, %v1350
  %v1361 = vmul.f32 %v1111, %v1350
  %v1362 = vmul.f32 %v1112, %v1350
  %v1363 = vmul.f32 %v1113, %v1350
  %v1364 = vmul.f32 %v1114, %v1350
  %v1365 = vmul.f32 %v1115, %v1350
  %v1366 = vmul.f32 %v1116, %v1350
  %v1367 = vmul.f32 %v1117, %v1350
  %v1368 = vmul.f32 %v1118, %v1350
  %v1369 = vmul.f32 %v1119, %v1350
  %v1370 = vmul.f32 %v1120, %v1350
  %v1371 = vmul.f32 %v1121, %v1350
  %v1372 = vmul.f32 %v1122, %v1350
  %v1373 = vmul.f32 %v1123, %v1350
  %v1374 = vmul.f32 %v1124, %v1350
  %v1375 = vmul.f32 %v1125, %v1350
  %v1376 = vmul.f32 %v1126, %v1350
  %v1377 = vmul.f32 %v1127, %v1350
  %v1378 = vmul.f32 %v1128, %v1350
  %v1379 = vmul.f32 %v1129, %v1350
  %v1380 = vmul.f32 %v1130, %v1350
  %v1381 = vmul.f32 %v1131, %v1350
  %v1382 = vmul.f32 %v1132, %v1350
  %v1383 = vlaneseq
  %v1384 = vshrl.u32 %v1383, 7
  %v1385 = vsub.s32 1, %v1384
  %v1386 = vrot.slane %v1346, %v1385
  %v1387 = vadd.f32 %v1351, %v1386
  %v1388 = vadd.f32 %v1352, %v1386
  %v1389 = vadd.f32 %v1353, %v1386
  %v1390 = vadd.f32 %v1354, %v1386
  %v1391 = vadd.f32 %v1355, %v1386
  %v1392 = vadd.f32 %v1356, %v1386
  %v1393 = vadd.f32 %v1357, %v1386
  %v1394 = vadd.f32 %v1358, %v1386
  %v1395 = vadd.f32 %v1359, %v1386
  %v1396 = vadd.f32 %v1360, %v1386
  %v1397 = vadd.f32 %v1361, %v1386
  %v1398 = vadd.f32 %v1362, %v1386
  %v1399 = vadd.f32 %v1363, %v1386
  %v1400 = vadd.f32 %v1364, %v1386
  %v1401 = vadd.f32 %v1365, %v1386
  %v1402 = vadd.f32 %v1366, %v1386
  %v1403 = vadd.f32 %v1367, %v1386
  %v1404 = vadd.f32 %v1368, %v1386
  %v1405 = vadd.f32 %v1369, %v1386
  %v1406 = vadd.f32 %v1370, %v1386
  %v1407 = vadd.f32 %v1371, %v1386
  %v1408 = vadd.f32 %v1372, %v1386
  %v1409 = vadd.f32 %v1373, %v1386
  %v1410 = vadd.f32 %v1374, %v1386
  %v1411 = vadd.f32 %v1375, %v1386
  %v1412 = vadd.f32 %v1376, %v1386
  %v1413 = vadd.f32 %v1377, %v1386
  %v1414 = vadd.f32 %v1378, %v1386
  %v1415 = vadd.f32 %v1379, %v1386
  %v1416 = vadd.f32 %v1380, %v1386
  %v1417 = vadd.f32 %v1381, %v1386
  %v1418 = vadd.f32 %v1382, %v1386
  %v1419 = vmax.f32 %v1387, 0.0
  %v1420 = vmax.f32 %v1388, 0.0
  %v1421 = vmax.f32 %v1389, 0.0
  %v1422 = vmax.f32 %v1390, 0.0
  %v1423 = vmax.f32 %v1391, 0.0
  %v1424 = vmax.f32 %v1392, 0.0
  %v1425 = vmax.f32 %v1393, 0.0
  %v1426 = vmax.f32 %v1394, 0.0
  %v1427 = vmax.f32 %v1395, 0.0
  %v1428 = vmax.f32 %v1396, 0.0
  %v1429 = vmax.f32 %v1397, 0.0
  %v1430 = vmax.f32 %v1398, 0.0
  %v1431 = vmax.f32 %v1399, 0.0
  %v1432 = vmax.f32 %v1400, 0.0
  %v1433 = vmax.f32 %v1401, 0.0
  %v1434 = vmax.f32 %v1402, 0.0
  %v1435 = vmax.f32 %v1403, 0.0
  %v1436 = vmax.f32 %v1404, 0.0
  %v1437 = vmax.f32 %v1405, 0.0
  %v1438 = vmax.f32 %v1406, 0.0
  %v1439 = vmax.f32 %v1407, 0.0
  %v1440 = vmax.f32 %v1408, 0.0
  %v1441 = vmax.f32 %v1409, 0.0
  %v1442 = vmax.f32 %v1410, 0.0
  %v1443 = vmax.f32 %v1411, 0.0
  %v1444 = vmax.f32 %v1412, 0.0
  %v1445 = vmax.f32 %v1413, 0.0
  %v1446 = vmax.f32 %v1414, 0.0
  %v1447 = vmax.f32 %v1415, 0.0
  %v1448 = vmax.f32 %v1416, 0.0
  %v1449 = vmax.f32 %v1417, 0.0
  %v1450 = vmax.f32 %v1418, 0.0
  %v1451 = vld [vmem:[%s3] sm:$0xff]
  %v1452 = vld [vmem:[%s3 + $0x8] sm:$0xff]
  %v1453 = vld [vmem:[%s3 + $0x10] sm:$0xff]
  %v1454 = vld [vmem:[%s3 + $0x18] sm:$0xff]
  %v1455 = vld [vmem:[%s3 + $0x20] sm:$0xff]
  %v1456 = vld [vmem:[%s3 + $0x28] sm:$0xff]
  %v1457 = vld [vmem:[%s3 + $0x30] sm:$0xff]
  %v1458 = vld [vmem:[%s3 + $0x38] sm:$0xff]
  %v1459 = vld [vmem:[%s3 + $0x40] sm:$0xff]
  %v1460 = vld [vmem:[%s3 + $0x48] sm:$0xff]
  %v1461 = vld [vmem:[%s3 + $0x50] sm:$0xff]
  %v1462 = vld [vmem:[%s3 + $0x58] sm:$0xff]
  %v1495 = vrot.slane %v1419, 7
  %v1496 = vrot.slane %v1420, 7
  %v1497 = vsel %vm87, %v1495, %v1496
  %v1498 = vrot.slane %v1421, 7
  %v1499 = vsel %vm87, %v1496, %v1498
  %v1500 = vrot.slane %v1422, 7
  %v1501 = vsel %vm87, %v1498, %v1500
  %v1502 = vrot.slane %v1423, 7
  %v1503 = vsel %vm87, %v1500, %v1502
  %v1504 = vrot.slane %v1424, 7
  %v1505 = vsel %vm87, %v1502, %v1504
  %v1506 = vrot.slane %v1425, 7
  %v1507 = vsel %vm87, %v1504, %v1506
  %v1508 = vrot.slane %v1426, 7
  %v1509 = vsel %vm87, %v1506, %v1508
  %v1510 = vrot.slane %v1427, 7
  %v1511 = vrot.slane %v1428, 7
  %v1512 = vsel %vm87, %v1510, %v1511
  %v1513 = vrot.slane %v1429, 7
  %v1514 = vsel %vm87, %v1511, %v1513
  %v1515 = vrot.slane %v1430, 7
  %v1516 = vsel %vm87, %v1513, %v1515
  %v1517 = vrot.slane %v1431, 7
  %v1518 = vsel %vm87, %v1515, %v1517
  %v1519 = vrot.slane %v1432, 7
  %v1520 = vsel %vm87, %v1517, %v1519
  %v1521 = vrot.slane %v1433, 7
  %v1522 = vsel %vm87, %v1519, %v1521
  %v1523 = vrot.slane %v1434, 7
  %v1524 = vsel %vm87, %v1521, %v1523
  %v1525 = vrot.slane %v1435, 7
  %v1526 = vrot.slane %v1436, 7
  %v1527 = vsel %vm87, %v1525, %v1526
  %v1528 = vrot.slane %v1437, 7
  %v1529 = vsel %vm87, %v1526, %v1528
  %v1530 = vrot.slane %v1438, 7
  %v1531 = vsel %vm87, %v1528, %v1530
  %v1532 = vrot.slane %v1439, 7
  %v1533 = vsel %vm87, %v1530, %v1532
  %v1534 = vrot.slane %v1440, 7
  %v1535 = vsel %vm87, %v1532, %v1534
  %v1536 = vrot.slane %v1441, 7
  %v1537 = vsel %vm87, %v1534, %v1536
  %v1538 = vrot.slane %v1442, 7
  %v1539 = vsel %vm87, %v1536, %v1538
  %v1540 = vrot.slane %v1443, 7
  %v1541 = vrot.slane %v1444, 7
  %v1542 = vsel %vm87, %v1540, %v1541
  %v1543 = vrot.slane %v1445, 7
  %v1544 = vsel %vm87, %v1541, %v1543
  %v1545 = vrot.slane %v1446, 7
  %v1546 = vsel %vm87, %v1543, %v1545
  %v1547 = vrot.slane %v1447, 7
  %v1548 = vsel %vm87, %v1545, %v1547
  %v1549 = vrot.slane %v1448, 7
  %v1550 = vsel %vm87, %v1547, %v1549
  %v1551 = vrot.slane %v1449, 7
  %v1552 = vsel %vm87, %v1549, %v1551
  %v1553 = vrot.slane %v1450, 7
  %v1554 = vsel %vm87, %v1551, %v1553
  %v1559 = vsel %vm87, 0.0, %v1495
  %v1560 = vsel %vm87, 0.0, %v1510
  %v1561 = vsel %vm87, 0.0, %v1525
  %v1562 = vsel %vm87, 0.0, %v1540
  %v1563 = vrot.slane %v1419, 1
  %v1564 = vrot.slane %v1420, 1
  %v1565 = vsel %vm156, %v1563, %v1564
  %v1566 = vrot.slane %v1421, 1
  %v1567 = vsel %vm156, %v1564, %v1566
  %v1568 = vrot.slane %v1422, 1
  %v1569 = vsel %vm156, %v1566, %v1568
  %v1570 = vrot.slane %v1423, 1
  %v1571 = vsel %vm156, %v1568, %v1570
  %v1572 = vrot.slane %v1424, 1
  %v1573 = vsel %vm156, %v1570, %v1572
  %v1574 = vrot.slane %v1425, 1
  %v1575 = vsel %vm156, %v1572, %v1574
  %v1576 = vrot.slane %v1426, 1
  %v1577 = vsel %vm156, %v1574, %v1576
  %v1578 = vrot.slane %v1427, 1
  %v1579 = vrot.slane %v1428, 1
  %v1580 = vsel %vm156, %v1578, %v1579
  %v1581 = vrot.slane %v1429, 1
  %v1582 = vsel %vm156, %v1579, %v1581
  %v1583 = vrot.slane %v1430, 1
  %v1584 = vsel %vm156, %v1581, %v1583
  %v1585 = vrot.slane %v1431, 1
  %v1586 = vsel %vm156, %v1583, %v1585
  %v1587 = vrot.slane %v1432, 1
  %v1588 = vsel %vm156, %v1585, %v1587
  %v1589 = vrot.slane %v1433, 1
  %v1590 = vsel %vm156, %v1587, %v1589
  %v1591 = vrot.slane %v1434, 1
  %v1592 = vsel %vm156, %v1589, %v1591
  %v1593 = vrot.slane %v1435, 1
  %v1594 = vrot.slane %v1436, 1
  %v1595 = vsel %vm156, %v1593, %v1594
  %v1596 = vrot.slane %v1437, 1
  %v1597 = vsel %vm156, %v1594, %v1596
  %v1598 = vrot.slane %v1438, 1
  %v1599 = vsel %vm156, %v1596, %v1598
  %v1600 = vrot.slane %v1439, 1
  %v1601 = vsel %vm156, %v1598, %v1600
  %v1602 = vrot.slane %v1440, 1
  %v1603 = vsel %vm156, %v1600, %v1602
  %v1604 = vrot.slane %v1441, 1
  %v1605 = vsel %vm156, %v1602, %v1604
  %v1606 = vrot.slane %v1442, 1
  %v1607 = vsel %vm156, %v1604, %v1606
  %v1608 = vrot.slane %v1443, 1
  %v1609 = vrot.slane %v1444, 1
  %v1610 = vsel %vm156, %v1608, %v1609
  %v1611 = vrot.slane %v1445, 1
  %v1612 = vsel %vm156, %v1609, %v1611
  %v1613 = vrot.slane %v1446, 1
  %v1614 = vsel %vm156, %v1611, %v1613
  %v1615 = vrot.slane %v1447, 1
  %v1616 = vsel %vm156, %v1613, %v1615
  %v1617 = vrot.slane %v1448, 1
  %v1618 = vsel %vm156, %v1615, %v1617
  %v1619 = vrot.slane %v1449, 1
  %v1620 = vsel %vm156, %v1617, %v1619
  %v1621 = vrot.slane %v1450, 1
  %v1622 = vsel %vm156, %v1619, %v1621
  %v1627 = vsel %vm156, %v1576, 0.0
  %v1628 = vsel %vm156, %v1591, 0.0
  %v1629 = vsel %vm156, %v1606, 0.0
  %v1630 = vsel %vm156, %v1621, 0.0
  %v1631 = vsel %vm1134, %v1419, 0
  %v1633 = vsel %vm1134, %v1420, 0
  %v1635 = vsel %vm1134, %v1421, 0
  %v1637 = vsel %vm1134, %v1422, 0
  %v1639 = vsel %vm1134, %v1423, 0
  %v1641 = vsel %vm1134, %v1424, 0
  %v1643 = vsel %vm1134, %v1425, 0
  %v1645 = vsel %vm1134, %v1426, 0
  %v1647 = vsel %vm1134, %v1427, 0
  %v1649 = vsel %vm1134, %v1428, 0
  %v1651 = vsel %vm1134, %v1429, 0
  %v1653 = vsel %vm1134, %v1430, 0
  %v1655 = vsel %vm1134, %v1431, 0
  %v1657 = vsel %vm1134, %v1432, 0
  %v1659 = vsel %vm1134, %v1433, 0
  %v1661 = vsel %vm1134, %v1434, 0
  %v1663 = vsel %vm1134, %v1435, 0
  %v1665 = vsel %vm1134, %v1436, 0
  %v1667 = vsel %vm1134, %v1437, 0
  %v1669 = vsel %vm1134, %v1438, 0
  %v1671 = vsel %vm1134, %v1439, 0
  %v1673 = vsel %vm1134, %v1440, 0
  %v1675 = vsel %vm1134, %v1441, 0
  %v1677 = vsel %vm1134, %v1442, 0
  %v1679 = vsel %vm1134, %v1443, 0
  %v1681 = vsel %vm1134, %v1444, 0
  %v1683 = vsel %vm1134, %v1445, 0
  %v1685 = vsel %vm1134, %v1446, 0
  %v1687 = vsel %vm1134, %v1447, 0
  %v1689 = vsel %vm1134, %v1448, 0
  %v1691 = vsel %vm1134, %v1449, 0
  %v1693 = vsel %vm1134, %v1450, 0
  %1695 = vmatprep.subr.mxu0 0.0
  %1696 = vmatpush1.msra.mxu0 %v1455
  %1697 = vmatprep.subr.mxu0 0.0
  %1698 = vmatpush1.msra.mxu0 %v1456
  %1699 = vmatprep.subr.mxu0 0.0
  %1700 = vmatpush1.msra.mxu0 %v1457
  %1701 = vmatprep.subr.mxu0 0.0
  %1702 = vmatpush1.msra.mxu0 %v1458
  %1703 = vmatprep.subr.mxu0 0.0
  %1704 = vmatpush1.msra.mxu0 0.0
  %1705 = vmatprep.subr.mxu0 0.0
  %1706 = vmatpush1.msra.mxu0 0.0
  %1707 = vmatprep.subr.mxu0 0.0
  %1708 = vmatpush1.msra.mxu0 0.0
  %1709 = vmatprep.subr.mxu0 0.0
  %1710 = vmatpush1.msra.mxu0 0.0
  %1711 = vmatprep.subr.mxu0 0.0
  %1712 = vmatpush1.msra.mxu0 0.0
  %1713 = vmatprep.subr.mxu0 0.0
  %1714 = vmatpush1.msra.mxu0 0.0
  %1715 = vmatprep.subr.mxu0 0.0
  %1716 = vmatpush1.msra.mxu0 0.0
  %1717 = vmatprep.subr.mxu0 0.0
  %1718 = vmatpush1.msra.mxu0 0.0
  %1719 = vmatprep.subr.mxu0 0.0
  %1720 = vmatpush1.msra.mxu0 0.0
  %1721 = vmatprep.subr.mxu0 0.0
  %1722 = vmatpush1.msra.mxu0 0.0
  %1723 = vmatprep.subr.mxu0 0.0
  %1724 = vmatpush1.msra.mxu0 0.0
  %1725 = vmatprep.subr.mxu0 0.0
  %1726 = vmatpush1.msra.mxu0 0.0
  %1727 = vmatprep.subr.mxu0 0.0
  %1728 = vmatpush1.msra.mxu0 0.0
  %1729 = vmatprep.subr.mxu0 0.0
  %1730 = vmatpush1.msra.mxu0 0.0
  %1731 = vmatprep.subr.mxu0 0.0
  %1732 = vmatpush1.msra.mxu0 0.0
  %1733 = vmatprep.subr.mxu0 0.0
  %1734 = vmatpush1.msra.mxu0 0.0
  %1735 = vmatprep.subr.mxu0 0.0
  %1736 = vmatpush1.msra.mxu0 0.0
  %1737 = vmatprep.subr.mxu0 0.0
  %1738 = vmatpush1.msra.mxu0 0.0
  %1739 = vmatprep.subr.mxu0 0.0
  %1740 = vmatpush1.msra.mxu0 0.0
  %1741 = vmatprep.subr.mxu0 0.0
  %1742 = vmatpush1.msra.mxu0 0.0
  %1743 = vmatprep.subr.mxu0 0.0
  %1744 = vmatpush1.msra.mxu0 0.0
  %1745 = vmatprep.subr.mxu0 0.0
  %1746 = vmatpush1.msra.mxu0 0.0
  %1747 = vmatprep.subr.mxu0 0.0
  %1748 = vmatpush1.msra.mxu0 0.0
  %1749 = vmatprep.subr.mxu0 0.0
  %1750 = vmatpush1.msra.mxu0 0.0
  %1751 = vmatprep.subr.mxu0 0.0
  %1752 = vmatpush1.msra.mxu0 0.0
  %1753 = vmatprep.subr.mxu0 0.0
  %1754 = vmatpush1.msra.mxu0 0.0
  %1755 = vmatprep.subr.mxu0 0.0
  %1756 = vmatpush1.msra.mxu0 0.0
  %1757 = vmatprep.subr.mxu0 0.0
  %1758 = vmatpush1.msra.mxu0 0.0
  %1759 = vmatprep.mubr.f32.mxu0 0.0
  %1760 = vmatmul.mubr.f32.gmra.mrb[0].mxu0 %v1631
  %v1761 = vpop.f32.mrb[0].mxu0
  %v1762 = vadd.f32 0.0, %v1761
  %v1763 = vpop.f32.mrb[0].mxu0
  %1764 = vmatprep.mubr.f32.mxu0 0.0
  %1765 = vmatmul.mubr.f32.gmra.mrb[0].mxu0 %v1633
  %v1766 = vpop.f32.mrb[0].mxu0
  %v1767 = vadd.f32 0.0, %v1766
  %v1768 = vpop.f32.mrb[0].mxu0
  %1769 = vmatprep.mubr.f32.mxu0 0.0
  %1770 = vmatmul.mubr.f32.gmra.mrb[0].mxu0 %v1635
  %v1771 = vpop.f32.mrb[0].mxu0
  %v1772 = vadd.f32 0.0, %v1771
  %v1773 = vpop.f32.mrb[0].mxu0
  %1774 = vmatprep.mubr.f32.mxu0 0.0
  %1775 = vmatmul.mubr.f32.gmra.mrb[0].mxu0 %v1637
  %v1776 = vpop.f32.mrb[0].mxu0
  %v1777 = vadd.f32 0.0, %v1776
  %v1778 = vpop.f32.mrb[0].mxu0
  %1779 = vmatprep.mubr.f32.mxu0 0.0
  %1780 = vmatmul.mubr.f32.gmra.mrb[0].mxu0 %v1639
  %v1781 = vpop.f32.mrb[0].mxu0
  %v1782 = vadd.f32 0.0, %v1781
  %v1783 = vpop.f32.mrb[0].mxu0
  %1784 = vmatprep.mubr.f32.mxu0 0.0
  %1785 = vmatmul.mubr.f32.gmra.mrb[0].mxu0 %v1641
  %v1786 = vpop.f32.mrb[0].mxu0
  %v1787 = vadd.f32 0.0, %v1786
  %v1788 = vpop.f32.mrb[0].mxu0
  %1789 = vmatprep.mubr.f32.mxu0 0.0
  %1790 = vmatmul.mubr.f32.gmra.mrb[0].mxu0 %v1643
  %v1791 = vpop.f32.mrb[0].mxu0
  %v1792 = vadd.f32 0.0, %v1791
  %v1793 = vpop.f32.mrb[0].mxu0
  %1794 = vmatprep.mubr.f32.mxu0 0.0
  %1795 = vmatmul.mubr.f32.gmra.mrb[0].mxu0 %v1645
  %v1796 = vpop.f32.mrb[0].mxu0
  %v1797 = vadd.f32 0.0, %v1796
  %v1798 = vpop.f32.mrb[0].mxu0
  %1799 = vmatprep.mubr.f32.mxu0 0.0
  %1800 = vmatmul.mubr.f32.gmra.mrb[0].mxu0 %v1647
  %v1801 = vpop.f32.mrb[0].mxu0
  %v1802 = vadd.f32 0.0, %v1801
  %v1803 = vpop.f32.mrb[0].mxu0
  %1804 = vmatprep.mubr.f32.mxu0 0.0
  %1805 = vmatmul.mubr.f32.gmra.mrb[0].mxu0 %v1649
  %v1806 = vpop.f32.mrb[0].mxu0
  %v1807 = vadd.f32 0.0, %v1806
  %v1808 = vpop.f32.mrb[0].mxu0
  %1809 = vmatprep.mubr.f32.mxu0 0.0
  %1810 = vmatmul.mubr.f32.gmra.mrb[0].mxu0 %v1651
  %v1811 = vpop.f32.mrb[0].mxu0
  %v1812 = vadd.f32 0.0, %v1811
  %v1813 = vpop.f32.mrb[0].mxu0
  %1814 = vmatprep.mubr.f32.mxu0 0.0
  %1815 = vmatmul.mubr.f32.gmra.mrb[0].mxu0 %v1653
  %v1816 = vpop.f32.mrb[0].mxu0
  %v1817 = vadd.f32 0.0, %v1816
  %v1818 = vpop.f32.mrb[0].mxu0
  %1819 = vmatprep.mubr.f32.mxu0 0.0
  %1820 = vmatmul.mubr.f32.gmra.mrb[0].mxu0 %v1655
  %v1821 = vpop.f32.mrb[0].mxu0
  %v1822 = vadd.f32 0.0, %v1821
  %v1823 = vpop.f32.mrb[0].mxu0
  %1824 = vmatprep.mubr.f32.mxu0 0.0
  %1825 = vmatmul.mubr.f32.gmra.mrb[0].mxu0 %v1657
  %v1826 = vpop.f32.mrb[0].mxu0
  %v1827 = vadd.f32 0.0, %v1826
  %v1828 = vpop.f32.mrb[0].mxu0
  %1829 = vmatprep.mubr.f32.mxu0 0.0
  %1830 = vmatmul.mubr.f32.gmra.mrb[0].mxu0 %v1659
  %v1831 = vpop.f32.mrb[0].mxu0
  %v1832 = vadd.f32 0.0, %v1831
  %v1833 = vpop.f32.mrb[0].mxu0
  %1834 = vmatprep.mubr.f32.mxu0 0.0
  %1835 = vmatmul.mubr.f32.gmra.mrb[0].mxu0 %v1661
  %v1836 = vpop.f32.mrb[0].mxu0
  %v1837 = vadd.f32 0.0, %v1836
  %v1838 = vpop.f32.mrb[0].mxu0
  %1839 = vmatprep.mubr.f32.mxu0 0.0
  %1840 = vmatmul.mubr.f32.gmra.mrb[0].mxu0 %v1663
  %v1841 = vpop.f32.mrb[0].mxu0
  %v1842 = vadd.f32 0.0, %v1841
  %v1843 = vpop.f32.mrb[0].mxu0
  %1844 = vmatprep.mubr.f32.mxu0 0.0
  %1845 = vmatmul.mubr.f32.gmra.mrb[0].mxu0 %v1665
  %v1846 = vpop.f32.mrb[0].mxu0
  %v1847 = vadd.f32 0.0, %v1846
  %v1848 = vpop.f32.mrb[0].mxu0
  %1849 = vmatprep.mubr.f32.mxu0 0.0
  %1850 = vmatmul.mubr.f32.gmra.mrb[0].mxu0 %v1667
  %v1851 = vpop.f32.mrb[0].mxu0
  %v1852 = vadd.f32 0.0, %v1851
  %v1853 = vpop.f32.mrb[0].mxu0
  %1854 = vmatprep.mubr.f32.mxu0 0.0
  %1855 = vmatmul.mubr.f32.gmra.mrb[0].mxu0 %v1669
  %v1856 = vpop.f32.mrb[0].mxu0
  %v1857 = vadd.f32 0.0, %v1856
  %v1858 = vpop.f32.mrb[0].mxu0
  %1859 = vmatprep.mubr.f32.mxu0 0.0
  %1860 = vmatmul.mubr.f32.gmra.mrb[0].mxu0 %v1671
  %v1861 = vpop.f32.mrb[0].mxu0
  %v1862 = vadd.f32 0.0, %v1861
  %v1863 = vpop.f32.mrb[0].mxu0
  %1864 = vmatprep.mubr.f32.mxu0 0.0
  %1865 = vmatmul.mubr.f32.gmra.mrb[0].mxu0 %v1673
  %v1866 = vpop.f32.mrb[0].mxu0
  %v1867 = vadd.f32 0.0, %v1866
  %v1868 = vpop.f32.mrb[0].mxu0
  %1869 = vmatprep.mubr.f32.mxu0 0.0
  %1870 = vmatmul.mubr.f32.gmra.mrb[0].mxu0 %v1675
  %v1871 = vpop.f32.mrb[0].mxu0
  %v1872 = vadd.f32 0.0, %v1871
  %v1873 = vpop.f32.mrb[0].mxu0
  %1874 = vmatprep.mubr.f32.mxu0 0.0
  %1875 = vmatmul.mubr.f32.gmra.mrb[0].mxu0 %v1677
  %v1876 = vpop.f32.mrb[0].mxu0
  %v1877 = vadd.f32 0.0, %v1876
  %v1878 = vpop.f32.mrb[0].mxu0
  %1879 = vmatprep.mubr.f32.mxu0 0.0
  %1880 = vmatmul.mubr.f32.gmra.mrb[0].mxu0 %v1679
  %v1881 = vpop.f32.mrb[0].mxu0
  %v1882 = vadd.f32 0.0, %v1881
  %v1883 = vpop.f32.mrb[0].mxu0
  %1884 = vmatprep.mubr.f32.mxu0 0.0
  %1885 = vmatmul.mubr.f32.gmra.mrb[0].mxu0 %v1681
  %v1886 = vpop.f32.mrb[0].mxu0
  %v1887 = vadd.f32 0.0, %v1886
  %v1888 = vpop.f32.mrb[0].mxu0
  %1889 = vmatprep.mubr.f32.mxu0 0.0
  %1890 = vmatmul.mubr.f32.gmra.mrb[0].mxu0 %v1683
  %v1891 = vpop.f32.mrb[0].mxu0
  %v1892 = vadd.f32 0.0, %v1891
  %v1893 = vpop.f32.mrb[0].mxu0
  %1894 = vmatprep.mubr.f32.mxu0 0.0
  %1895 = vmatmul.mubr.f32.gmra.mrb[0].mxu0 %v1685
  %v1896 = vpop.f32.mrb[0].mxu0
  %v1897 = vadd.f32 0.0, %v1896
  %v1898 = vpop.f32.mrb[0].mxu0
  %1899 = vmatprep.mubr.f32.mxu0 0.0
  %1900 = vmatmul.mubr.f32.gmra.mrb[0].mxu0 %v1687
  %v1901 = vpop.f32.mrb[0].mxu0
  %v1902 = vadd.f32 0.0, %v1901
  %v1903 = vpop.f32.mrb[0].mxu0
  %1904 = vmatprep.mubr.f32.mxu0 0.0
  %1905 = vmatmul.mubr.f32.gmra.mrb[0].mxu0 %v1689
  %v1906 = vpop.f32.mrb[0].mxu0
  %v1907 = vadd.f32 0.0, %v1906
  %v1908 = vpop.f32.mrb[0].mxu0
  %1909 = vmatprep.mubr.f32.mxu0 0.0
  %1910 = vmatmul.mubr.f32.gmra.mrb[0].mxu0 %v1691
  %v1911 = vpop.f32.mrb[0].mxu0
  %v1912 = vadd.f32 0.0, %v1911
  %v1913 = vpop.f32.mrb[0].mxu0
  %1914 = vmatprep.mubr.f32.mxu0 0.0
  %1915 = vmatmul.mubr.f32.gmra.mrb[0].mxu0 %v1693
  %v1916 = vpop.f32.mrb[0].mxu0
  %v1917 = vadd.f32 0.0, %v1916
  %v1918 = vpop.f32.mrb[0].mxu0
  %1919 = vdwg.mxu0
  %v1921 = vsel %vm1134, %v1559, 0
  %v1923 = vsel %vm1134, %v1497, 0
  %v1925 = vsel %vm1134, %v1499, 0
  %v1927 = vsel %vm1134, %v1501, 0
  %v1929 = vsel %vm1134, %v1503, 0
  %v1931 = vsel %vm1134, %v1505, 0
  %v1933 = vsel %vm1134, %v1507, 0
  %v1935 = vsel %vm1134, %v1509, 0
  %v1938 = vsel %vm1134, %v1560, 0
  %v1940 = vsel %vm1134, %v1512, 0
  %v1942 = vsel %vm1134, %v1514, 0
  %v1944 = vsel %vm1134, %v1516, 0
  %v1946 = vsel %vm1134, %v1518, 0
  %v1948 = vsel %vm1134, %v1520, 0
  %v1950 = vsel %vm1134, %v1522, 0
  %v1952 = vsel %vm1134, %v1524, 0
  %v1955 = vsel %vm1134, %v1561, 0
  %v1957 = vsel %vm1134, %v1527, 0
  %v1959 = vsel %vm1134, %v1529, 0
  %v1961 = vsel %vm1134, %v1531, 0
  %v1963 = vsel %vm1134, %v1533, 0
  %v1965 = vsel %vm1134, %v1535, 0
  %v1967 = vsel %vm1134, %v1537, 0
  %v1969 = vsel %vm1134, %v1539, 0
  %v1972 = vsel %vm1134, %v1562, 0
  %v1974 = vsel %vm1134, %v1542, 0
  %v1976 = vsel %vm1134, %v1544, 0
  %v1978 = vsel %vm1134, %v1546, 0
  %v1980 = vsel %vm1134, %v1548, 0
  %v1982 = vsel %vm1134, %v1550, 0
  %v1984 = vsel %vm1134, %v1552, 0
  %v1986 = vsel %vm1134, %v1554, 0
  %1988 = vmatprep.subr.mxu0 0.0
  %1989 = vmatpush1.msra.mxu0 %v1451
  %1990 = vmatprep.subr.mxu0 0.0
  %1991 = vmatpush1.msra.mxu0 %v1452
  %1992 = vmatprep.subr.mxu0 0.0
  %1993 = vmatpush1.msra.mxu0 %v1453
  %1994 = vmatprep.subr.mxu0 0.0
  %1995 = vmatpush1.msra.mxu0 %v1454
  %1996 = vmatprep.subr.mxu0 0.0
  %1997 = vmatpush1.msra.mxu0 0.0
  %1998 = vmatprep.subr.mxu0 0.0
  %1999 = vmatpush1.msra.mxu0 0.0
  %2000 = vmatprep.subr.mxu0 0.0
  %2001 = vmatpush1.msra.mxu0 0.0
  %2002 = vmatprep.subr.mxu0 0.0
  %2003 = vmatpush1.msra.mxu0 0.0
  %2004 = vmatprep.subr.mxu0 0.0
  %2005 = vmatpush1.msra.mxu0 0.0
  %2006 = vmatprep.subr.mxu0 0.0
  %2007 = vmatpush1.msra.mxu0 0.0
  %2008 = vmatprep.subr.mxu0 0.0
  %2009 = vmatpush1.msra.mxu0 0.0
  %2010 = vmatprep.subr.mxu0 0.0
  %2011 = vmatpush1.msra.mxu0 0.0
  %2012 = vmatprep.subr.mxu0 0.0
  %2013 = vmatpush1.msra.mxu0 0.0
  %2014 = vmatprep.subr.mxu0 0.0
  %2015 = vmatpush1.msra.mxu0 0.0
  %2016 = vmatprep.subr.mxu0 0.0
  %2017 = vmatpush1.msra.mxu0 0.0
  %2018 = vmatprep.subr.mxu0 0.0
  %2019 = vmatpush1.msra.mxu0 0.0
  %2020 = vmatprep.subr.mxu0 0.0
  %2021 = vmatpush1.msra.mxu0 0.0
  %2022 = vmatprep.subr.mxu0 0.0
  %2023 = vmatpush1.msra.mxu0 0.0
  %2024 = vmatprep.subr.mxu0 0.0
  %2025 = vmatpush1.msra.mxu0 0.0
  %2026 = vmatprep.subr.mxu0 0.0
  %2027 = vmatpush1.msra.mxu0 0.0
  %2028 = vmatprep.subr.mxu0 0.0
  %2029 = vmatpush1.msra.mxu0 0.0
  %2030 = vmatprep.subr.mxu0 0.0
  %2031 = vmatpush1.msra.mxu0 0.0
  %2032 = vmatprep.subr.mxu0 0.0
  %2033 = vmatpush1.msra.mxu0 0.0
  %2034 = vmatprep.subr.mxu0 0.0
  %2035 = vmatpush1.msra.mxu0 0.0
  %2036 = vmatprep.subr.mxu0 0.0
  %2037 = vmatpush1.msra.mxu0 0.0
  %2038 = vmatprep.subr.mxu0 0.0
  %2039 = vmatpush1.msra.mxu0 0.0
  %2040 = vmatprep.subr.mxu0 0.0
  %2041 = vmatpush1.msra.mxu0 0.0
  %2042 = vmatprep.subr.mxu0 0.0
  %2043 = vmatpush1.msra.mxu0 0.0
  %2044 = vmatprep.subr.mxu0 0.0
  %2045 = vmatpush1.msra.mxu0 0.0
  %2046 = vmatprep.subr.mxu0 0.0
  %2047 = vmatpush1.msra.mxu0 0.0
  %2048 = vmatprep.subr.mxu0 0.0
  %2049 = vmatpush1.msra.mxu0 0.0
  %2050 = vmatprep.subr.mxu0 0.0
  %2051 = vmatpush1.msra.mxu0 0.0
  %2052 = vmatprep.mubr.f32.mxu0 0.0
  %2053 = vmatmul.mubr.f32.gmra.mrb[0].mxu0 %v1921
  %v2054 = vpop.f32.mrb[0].mxu0
  %v2055 = vadd.f32 %v1762, %v2054
  %v2056 = vpop.f32.mrb[0].mxu0
  %2057 = vmatprep.mubr.f32.mxu0 0.0
  %2058 = vmatmul.mubr.f32.gmra.mrb[0].mxu0 %v1923
  %v2059 = vpop.f32.mrb[0].mxu0
  %v2060 = vadd.f32 %v1767, %v2059
  %v2061 = vpop.f32.mrb[0].mxu0
  %2062 = vmatprep.mubr.f32.mxu0 0.0
  %2063 = vmatmul.mubr.f32.gmra.mrb[0].mxu0 %v1925
  %v2064 = vpop.f32.mrb[0].mxu0
  %v2065 = vadd.f32 %v1772, %v2064
  %v2066 = vpop.f32.mrb[0].mxu0
  %2067 = vmatprep.mubr.f32.mxu0 0.0
  %2068 = vmatmul.mubr.f32.gmra.mrb[0].mxu0 %v1927
  %v2069 = vpop.f32.mrb[0].mxu0
  %v2070 = vadd.f32 %v1777, %v2069
  %v2071 = vpop.f32.mrb[0].mxu0
  %2072 = vmatprep.mubr.f32.mxu0 0.0
  %2073 = vmatmul.mubr.f32.gmra.mrb[0].mxu0 %v1929
  %v2074 = vpop.f32.mrb[0].mxu0
  %v2075 = vadd.f32 %v1782, %v2074
  %v2076 = vpop.f32.mrb[0].mxu0
  %2077 = vmatprep.mubr.f32.mxu0 0.0
  %2078 = vmatmul.mubr.f32.gmra.mrb[0].mxu0 %v1931
  %v2079 = vpop.f32.mrb[0].mxu0
  %v2080 = vadd.f32 %v1787, %v2079
  %v2081 = vpop.f32.mrb[0].mxu0
  %2082 = vmatprep.mubr.f32.mxu0 0.0
  %2083 = vmatmul.mubr.f32.gmra.mrb[0].mxu0 %v1933
  %v2084 = vpop.f32.mrb[0].mxu0
  %v2085 = vadd.f32 %v1792, %v2084
  %v2086 = vpop.f32.mrb[0].mxu0
  %2087 = vmatprep.mubr.f32.mxu0 0.0
  %2088 = vmatmul.mubr.f32.gmra.mrb[0].mxu0 %v1935
  %v2089 = vpop.f32.mrb[0].mxu0
  %v2090 = vadd.f32 %v1797, %v2089
  %v2091 = vpop.f32.mrb[0].mxu0
  %2092 = vmatprep.mubr.f32.mxu0 0.0
  %2093 = vmatmul.mubr.f32.gmra.mrb[0].mxu0 %v1938
  %v2094 = vpop.f32.mrb[0].mxu0
  %v2095 = vadd.f32 %v1802, %v2094
  %v2096 = vpop.f32.mrb[0].mxu0
  %2097 = vmatprep.mubr.f32.mxu0 0.0
  %2098 = vmatmul.mubr.f32.gmra.mrb[0].mxu0 %v1940
  %v2099 = vpop.f32.mrb[0].mxu0
  %v2100 = vadd.f32 %v1807, %v2099
  %v2101 = vpop.f32.mrb[0].mxu0
  %2102 = vmatprep.mubr.f32.mxu0 0.0
  %2103 = vmatmul.mubr.f32.gmra.mrb[0].mxu0 %v1942
  %v2104 = vpop.f32.mrb[0].mxu0
  %v2105 = vadd.f32 %v1812, %v2104
  %v2106 = vpop.f32.mrb[0].mxu0
  %2107 = vmatprep.mubr.f32.mxu0 0.0
  %2108 = vmatmul.mubr.f32.gmra.mrb[0].mxu0 %v1944
  %v2109 = vpop.f32.mrb[0].mxu0
  %v2110 = vadd.f32 %v1817, %v2109
  %v2111 = vpop.f32.mrb[0].mxu0
  %2112 = vmatprep.mubr.f32.mxu0 0.0
  %2113 = vmatmul.mubr.f32.gmra.mrb[0].mxu0 %v1946
  %v2114 = vpop.f32.mrb[0].mxu0
  %v2115 = vadd.f32 %v1822, %v2114
  %v2116 = vpop.f32.mrb[0].mxu0
  %2117 = vmatprep.mubr.f32.mxu0 0.0
  %2118 = vmatmul.mubr.f32.gmra.mrb[0].mxu0 %v1948
  %v2119 = vpop.f32.mrb[0].mxu0
  %v2120 = vadd.f32 %v1827, %v2119
  %v2121 = vpop.f32.mrb[0].mxu0
  %2122 = vmatprep.mubr.f32.mxu0 0.0
  %2123 = vmatmul.mubr.f32.gmra.mrb[0].mxu0 %v1950
  %v2124 = vpop.f32.mrb[0].mxu0
  %v2125 = vadd.f32 %v1832, %v2124
  %v2126 = vpop.f32.mrb[0].mxu0
  %2127 = vmatprep.mubr.f32.mxu0 0.0
  %2128 = vmatmul.mubr.f32.gmra.mrb[0].mxu0 %v1952
  %v2129 = vpop.f32.mrb[0].mxu0
  %v2130 = vadd.f32 %v1837, %v2129
  %v2131 = vpop.f32.mrb[0].mxu0
  %2132 = vmatprep.mubr.f32.mxu0 0.0
  %2133 = vmatmul.mubr.f32.gmra.mrb[0].mxu0 %v1955
  %v2134 = vpop.f32.mrb[0].mxu0
  %v2135 = vadd.f32 %v1842, %v2134
  %v2136 = vpop.f32.mrb[0].mxu0
  %2137 = vmatprep.mubr.f32.mxu0 0.0
  %2138 = vmatmul.mubr.f32.gmra.mrb[0].mxu0 %v1957
  %v2139 = vpop.f32.mrb[0].mxu0
  %v2140 = vadd.f32 %v1847, %v2139
  %v2141 = vpop.f32.mrb[0].mxu0
  %2142 = vmatprep.mubr.f32.mxu0 0.0
  %2143 = vmatmul.mubr.f32.gmra.mrb[0].mxu0 %v1959
  %v2144 = vpop.f32.mrb[0].mxu0
  %v2145 = vadd.f32 %v1852, %v2144
  %v2146 = vpop.f32.mrb[0].mxu0
  %2147 = vmatprep.mubr.f32.mxu0 0.0
  %2148 = vmatmul.mubr.f32.gmra.mrb[0].mxu0 %v1961
  %v2149 = vpop.f32.mrb[0].mxu0
  %v2150 = vadd.f32 %v1857, %v2149
  %v2151 = vpop.f32.mrb[0].mxu0
  %2152 = vmatprep.mubr.f32.mxu0 0.0
  %2153 = vmatmul.mubr.f32.gmra.mrb[0].mxu0 %v1963
  %v2154 = vpop.f32.mrb[0].mxu0
  %v2155 = vadd.f32 %v1862, %v2154
  %v2156 = vpop.f32.mrb[0].mxu0
  %2157 = vmatprep.mubr.f32.mxu0 0.0
  %2158 = vmatmul.mubr.f32.gmra.mrb[0].mxu0 %v1965
  %v2159 = vpop.f32.mrb[0].mxu0
  %v2160 = vadd.f32 %v1867, %v2159
  %v2161 = vpop.f32.mrb[0].mxu0
  %2162 = vmatprep.mubr.f32.mxu0 0.0
  %2163 = vmatmul.mubr.f32.gmra.mrb[0].mxu0 %v1967
  %v2164 = vpop.f32.mrb[0].mxu0
  %v2165 = vadd.f32 %v1872, %v2164
  %v2166 = vpop.f32.mrb[0].mxu0
  %2167 = vmatprep.mubr.f32.mxu0 0.0
  %2168 = vmatmul.mubr.f32.gmra.mrb[0].mxu0 %v1969
  %v2169 = vpop.f32.mrb[0].mxu0
  %v2170 = vadd.f32 %v1877, %v2169
  %v2171 = vpop.f32.mrb[0].mxu0
  %2172 = vmatprep.mubr.f32.mxu0 0.0
  %2173 = vmatmul.mubr.f32.gmra.mrb[0].mxu0 %v1972
  %v2174 = vpop.f32.mrb[0].mxu0
  %v2175 = vadd.f32 %v1882, %v2174
  %v2176 = vpop.f32.mrb[0].mxu0
  %2177 = vmatprep.mubr.f32.mxu0 0.0
  %2178 = vmatmul.mubr.f32.gmra.mrb[0].mxu0 %v1974
  %v2179 = vpop.f32.mrb[0].mxu0
  %v2180 = vadd.f32 %v1887, %v2179
  %v2181 = vpop.f32.mrb[0].mxu0
  %2182 = vmatprep.mubr.f32.mxu0 0.0
  %2183 = vmatmul.mubr.f32.gmra.mrb[0].mxu0 %v1976
  %v2184 = vpop.f32.mrb[0].mxu0
  %v2185 = vadd.f32 %v1892, %v2184
  %v2186 = vpop.f32.mrb[0].mxu0
  %2187 = vmatprep.mubr.f32.mxu0 0.0
  %2188 = vmatmul.mubr.f32.gmra.mrb[0].mxu0 %v1978
  %v2189 = vpop.f32.mrb[0].mxu0
  %v2190 = vadd.f32 %v1897, %v2189
  %v2191 = vpop.f32.mrb[0].mxu0
  %2192 = vmatprep.mubr.f32.mxu0 0.0
  %2193 = vmatmul.mubr.f32.gmra.mrb[0].mxu0 %v1980
  %v2194 = vpop.f32.mrb[0].mxu0
  %v2195 = vadd.f32 %v1902, %v2194
  %v2196 = vpop.f32.mrb[0].mxu0
  %2197 = vmatprep.mubr.f32.mxu0 0.0
  %2198 = vmatmul.mubr.f32.gmra.mrb[0].mxu0 %v1982
  %v2199 = vpop.f32.mrb[0].mxu0
  %v2200 = vadd.f32 %v1907, %v2199
  %v2201 = vpop.f32.mrb[0].mxu0
  %2202 = vmatprep.mubr.f32.mxu0 0.0
  %2203 = vmatmul.mubr.f32.gmra.mrb[0].mxu0 %v1984
  %v2204 = vpop.f32.mrb[0].mxu0
  %v2205 = vadd.f32 %v1912, %v2204
  %v2206 = vpop.f32.mrb[0].mxu0
  %2207 = vmatprep.mubr.f32.mxu0 0.0
  %2208 = vmatmul.mubr.f32.gmra.mrb[0].mxu0 %v1986
  %v2209 = vpop.f32.mrb[0].mxu0
  %v2210 = vadd.f32 %v1917, %v2209
  %v2211 = vpop.f32.mrb[0].mxu0
  %2212 = vdwg.mxu0
  %v2213 = vsel %vm1134, %v1565, 0
  %v2215 = vsel %vm1134, %v1567, 0
  %v2217 = vsel %vm1134, %v1569, 0
  %v2219 = vsel %vm1134, %v1571, 0
  %v2221 = vsel %vm1134, %v1573, 0
  %v2223 = vsel %vm1134, %v1575, 0
  %v2225 = vsel %vm1134, %v1577, 0
  %v2228 = vsel %vm1134, %v1627, 0
  %v2230 = vsel %vm1134, %v1580, 0
  %v2232 = vsel %vm1134, %v1582, 0
  %v2234 = vsel %vm1134, %v1584, 0
  %v2236 = vsel %vm1134, %v1586, 0
  %v2238 = vsel %vm1134, %v1588, 0
  %v2240 = vsel %vm1134, %v1590, 0
  %v2242 = vsel %vm1134, %v1592, 0
  %v2245 = vsel %vm1134, %v1628, 0
  %v2247 = vsel %vm1134, %v1595, 0
  %v2249 = vsel %vm1134, %v1597, 0
  %v2251 = vsel %vm1134, %v1599, 0
  %v2253 = vsel %vm1134, %v1601, 0
  %v2255 = vsel %vm1134, %v1603, 0
  %v2257 = vsel %vm1134, %v1605, 0
  %v2259 = vsel %vm1134, %v1607, 0
  %v2262 = vsel %vm1134, %v1629, 0
  %v2264 = vsel %vm1134, %v1610, 0
  %v2266 = vsel %vm1134, %v1612, 0
  %v2268 = vsel %vm1134, %v1614, 0
  %v2270 = vsel %vm1134, %v1616, 0
  %v2272 = vsel %vm1134, %v1618, 0
  %v2274 = vsel %vm1134, %v1620, 0
  %v2276 = vsel %vm1134, %v1622, 0
  %v2279 = vsel %vm1134, %v1630, 0
  %2281 = vmatprep.subr.mxu0 0.0
  %2282 = vmatpush1.msra.mxu0 %v1459
  %2283 = vmatprep.subr.mxu0 0.0
  %2284 = vmatpush1.msra.mxu0 %v1460
  %2285 = vmatprep.subr.mxu0 0.0
  %2286 = vmatpush1.msra.mxu0 %v1461
  %2287 = vmatprep.subr.mxu0 0.0
  %2288 = vmatpush1.msra.mxu0 %v1462
  %2289 = vmatprep.subr.mxu0 0.0
  %2290 = vmatpush1.msra.mxu0 0.0
  %2291 = vmatprep.subr.mxu0 0.0
  %2292 = vmatpush1.msra.mxu0 0.0
  %2293 = vmatprep.subr.mxu0 0.0
  %2294 = vmatpush1.msra.mxu0 0.0
  %2295 = vmatprep.subr.mxu0 0.0
  %2296 = vmatpush1.msra.mxu0 0.0
  %2297 = vmatprep.subr.mxu0 0.0
  %2298 = vmatpush1.msra.mxu0 0.0
  %2299 = vmatprep.subr.mxu0 0.0
  %2300 = vmatpush1.msra.mxu0 0.0
  %2301 = vmatprep.subr.mxu0 0.0
  %2302 = vmatpush1.msra.mxu0 0.0
  %2303 = vmatprep.subr.mxu0 0.0
  %2304 = vmatpush1.msra.mxu0 0.0
  %2305 = vmatprep.subr.mxu0 0.0
  %2306 = vmatpush1.msra.mxu0 0.0
  %2307 = vmatprep.subr.mxu0 0.0
  %2308 = vmatpush1.msra.mxu0 0.0
  %2309 = vmatprep.subr.mxu0 0.0
  %2310 = vmatpush1.msra.mxu0 0.0
  %2311 = vmatprep.subr.mxu0 0.0
  %2312 = vmatpush1.msra.mxu0 0.0
  %2313 = vmatprep.subr.mxu0 0.0
  %2314 = vmatpush1.msra.mxu0 0.0
  %2315 = vmatprep.subr.mxu0 0.0
  %2316 = vmatpush1.msra.mxu0 0.0
  %2317 = vmatprep.subr.mxu0 0.0
  %2318 = vmatpush1.msra.mxu0 0.0
  %2319 = vmatprep.subr.mxu0 0.0
  %2320 = vmatpush1.msra.mxu0 0.0
  %2321 = vmatprep.subr.mxu0 0.0
  %2322 = vmatpush1.msra.mxu0 0.0
  %2323 = vmatprep.subr.mxu0 0.0
  %2324 = vmatpush1.msra.mxu0 0.0
  %2325 = vmatprep.subr.mxu0 0.0
  %2326 = vmatpush1.msra.mxu0 0.0
  %2327 = vmatprep.subr.mxu0 0.0
  %2328 = vmatpush1.msra.mxu0 0.0
  %2329 = vmatprep.subr.mxu0 0.0
  %2330 = vmatpush1.msra.mxu0 0.0
  %2331 = vmatprep.subr.mxu0 0.0
  %2332 = vmatpush1.msra.mxu0 0.0
  %2333 = vmatprep.subr.mxu0 0.0
  %2334 = vmatpush1.msra.mxu0 0.0
  %2335 = vmatprep.subr.mxu0 0.0
  %2336 = vmatpush1.msra.mxu0 0.0
  %2337 = vmatprep.subr.mxu0 0.0
  %2338 = vmatpush1.msra.mxu0 0.0
  %2339 = vmatprep.subr.mxu0 0.0
  %2340 = vmatpush1.msra.mxu0 0.0
  %2341 = vmatprep.subr.mxu0 0.0
  %2342 = vmatpush1.msra.mxu0 0.0
  %2343 = vmatprep.subr.mxu0 0.0
  %2344 = vmatpush1.msra.mxu0 0.0
  %2345 = vmatprep.mubr.f32.mxu0 0.0
  %2346 = vmatmul.mubr.f32.gmra.mrb[0].mxu0 %v2213
  %v2347 = vpop.f32.mrb[0].mxu0
  %v2348 = vadd.f32 0.0, %v2347
  %v2349 = vpop.f32.mrb[0].mxu0
  %2350 = vmatprep.mubr.f32.mxu0 0.0
  %2351 = vmatmul.mubr.f32.gmra.mrb[0].mxu0 %v2215
  %v2352 = vpop.f32.mrb[0].mxu0
  %v2353 = vadd.f32 0.0, %v2352
  %v2354 = vpop.f32.mrb[0].mxu0
  %2355 = vmatprep.mubr.f32.mxu0 0.0
  %2356 = vmatmul.mubr.f32.gmra.mrb[0].mxu0 %v2217
  %v2357 = vpop.f32.mrb[0].mxu0
  %v2358 = vadd.f32 0.0, %v2357
  %v2359 = vpop.f32.mrb[0].mxu0
  %2360 = vmatprep.mubr.f32.mxu0 0.0
  %2361 = vmatmul.mubr.f32.gmra.mrb[0].mxu0 %v2219
  %v2362 = vpop.f32.mrb[0].mxu0
  %v2363 = vadd.f32 0.0, %v2362
  %v2364 = vpop.f32.mrb[0].mxu0
  %2365 = vmatprep.mubr.f32.mxu0 0.0
  %2366 = vmatmul.mubr.f32.gmra.mrb[0].mxu0 %v2221
  %v2367 = vpop.f32.mrb[0].mxu0
  %v2368 = vadd.f32 0.0, %v2367
  %v2369 = vpop.f32.mrb[0].mxu0
  %2370 = vmatprep.mubr.f32.mxu0 0.0
  %2371 = vmatmul.mubr.f32.gmra.mrb[0].mxu0 %v2223
  %v2372 = vpop.f32.mrb[0].mxu0
  %v2373 = vadd.f32 0.0, %v2372
  %v2374 = vpop.f32.mrb[0].mxu0
  %2375 = vmatprep.mubr.f32.mxu0 0.0
  %2376 = vmatmul.mubr.f32.gmra.mrb[0].mxu0 %v2225
  %v2377 = vpop.f32.mrb[0].mxu0
  %v2378 = vadd.f32 0.0, %v2377
  %v2379 = vpop.f32.mrb[0].mxu0
  %2380 = vmatprep.mubr.f32.mxu0 0.0
  %2381 = vmatmul.mubr.f32.gmra.mrb[0].mxu0 %v2228
  %v2382 = vpop.f32.mrb[0].mxu0
  %v2383 = vadd.f32 0.0, %v2382
  %v2384 = vpop.f32.mrb[0].mxu0
  %2385 = vmatprep.mubr.f32.mxu0 0.0
  %2386 = vmatmul.mubr.f32.gmra.mrb[0].mxu0 %v2230
  %v2387 = vpop.f32.mrb[0].mxu0
  %v2388 = vadd.f32 0.0, %v2387
  %v2389 = vpop.f32.mrb[0].mxu0
  %2390 = vmatprep.mubr.f32.mxu0 0.0
  %2391 = vmatmul.mubr.f32.gmra.mrb[0].mxu0 %v2232
  %v2392 = vpop.f32.mrb[0].mxu0
  %v2393 = vadd.f32 0.0, %v2392
  %v2394 = vpop.f32.mrb[0].mxu0
  %2395 = vmatprep.mubr.f32.mxu0 0.0
  %2396 = vmatmul.mubr.f32.gmra.mrb[0].mxu0 %v2234
  %v2397 = vpop.f32.mrb[0].mxu0
  %v2398 = vadd.f32 0.0, %v2397
  %v2399 = vpop.f32.mrb[0].mxu0
  %2400 = vmatprep.mubr.f32.mxu0 0.0
  %2401 = vmatmul.mubr.f32.gmra.mrb[0].mxu0 %v2236
  %v2402 = vpop.f32.mrb[0].mxu0
  %v2403 = vadd.f32 0.0, %v2402
  %v2404 = vpop.f32.mrb[0].mxu0
  %2405 = vmatprep.mubr.f32.mxu0 0.0
  %2406 = vmatmul.mubr.f32.gmra.mrb[0].mxu0 %v2238
  %v2407 = vpop.f32.mrb[0].mxu0
  %v2408 = vadd.f32 0.0, %v2407
  %v2409 = vpop.f32.mrb[0].mxu0
  %2410 = vmatprep.mubr.f32.mxu0 0.0
  %2411 = vmatmul.mubr.f32.gmra.mrb[0].mxu0 %v2240
  %v2412 = vpop.f32.mrb[0].mxu0
  %v2413 = vadd.f32 0.0, %v2412
  %v2414 = vpop.f32.mrb[0].mxu0
  %2415 = vmatprep.mubr.f32.mxu0 0.0
  %2416 = vmatmul.mubr.f32.gmra.mrb[0].mxu0 %v2242
  %v2417 = vpop.f32.mrb[0].mxu0
  %v2418 = vadd.f32 0.0, %v2417
  %v2419 = vpop.f32.mrb[0].mxu0
  %2420 = vmatprep.mubr.f32.mxu0 0.0
  %2421 = vmatmul.mubr.f32.gmra.mrb[0].mxu0 %v2245
  %v2422 = vpop.f32.mrb[0].mxu0
  %v2423 = vadd.f32 0.0, %v2422
  %v2424 = vpop.f32.mrb[0].mxu0
  %2425 = vmatprep.mubr.f32.mxu0 0.0
  %2426 = vmatmul.mubr.f32.gmra.mrb[0].mxu0 %v2247
  %v2427 = vpop.f32.mrb[0].mxu0
  %v2428 = vadd.f32 0.0, %v2427
  %v2429 = vpop.f32.mrb[0].mxu0
  %2430 = vmatprep.mubr.f32.mxu0 0.0
  %2431 = vmatmul.mubr.f32.gmra.mrb[0].mxu0 %v2249
  %v2432 = vpop.f32.mrb[0].mxu0
  %v2433 = vadd.f32 0.0, %v2432
  %v2434 = vpop.f32.mrb[0].mxu0
  %2435 = vmatprep.mubr.f32.mxu0 0.0
  %2436 = vmatmul.mubr.f32.gmra.mrb[0].mxu0 %v2251
  %v2437 = vpop.f32.mrb[0].mxu0
  %v2438 = vadd.f32 0.0, %v2437
  %v2439 = vpop.f32.mrb[0].mxu0
  %2440 = vmatprep.mubr.f32.mxu0 0.0
  %2441 = vmatmul.mubr.f32.gmra.mrb[0].mxu0 %v2253
  %v2442 = vpop.f32.mrb[0].mxu0
  %v2443 = vadd.f32 0.0, %v2442
  %v2444 = vpop.f32.mrb[0].mxu0
  %2445 = vmatprep.mubr.f32.mxu0 0.0
  %2446 = vmatmul.mubr.f32.gmra.mrb[0].mxu0 %v2255
  %v2447 = vpop.f32.mrb[0].mxu0
  %v2448 = vadd.f32 0.0, %v2447
  %v2449 = vpop.f32.mrb[0].mxu0
  %2450 = vmatprep.mubr.f32.mxu0 0.0
  %2451 = vmatmul.mubr.f32.gmra.mrb[0].mxu0 %v2257
  %v2452 = vpop.f32.mrb[0].mxu0
  %v2453 = vadd.f32 0.0, %v2452
  %v2454 = vpop.f32.mrb[0].mxu0
  %2455 = vmatprep.mubr.f32.mxu0 0.0
  %2456 = vmatmul.mubr.f32.gmra.mrb[0].mxu0 %v2259
  %v2457 = vpop.f32.mrb[0].mxu0
  %v2458 = vadd.f32 0.0, %v2457
  %v2459 = vpop.f32.mrb[0].mxu0
  %2460 = vmatprep.mubr.f32.mxu0 0.0
  %2461 = vmatmul.mubr.f32.gmra.mrb[0].mxu0 %v2262
  %v2462 = vpop.f32.mrb[0].mxu0
  %v2463 = vadd.f32 0.0, %v2462
  %v2464 = vpop.f32.mrb[0].mxu0
  %2465 = vmatprep.mubr.f32.mxu0 0.0
  %2466 = vmatmul.mubr.f32.gmra.mrb[0].mxu0 %v2264
  %v2467 = vpop.f32.mrb[0].mxu0
  %v2468 = vadd.f32 0.0, %v2467
  %v2469 = vpop.f32.mrb[0].mxu0
  %2470 = vmatprep.mubr.f32.mxu0 0.0
  %2471 = vmatmul.mubr.f32.gmra.mrb[0].mxu0 %v2266
  %v2472 = vpop.f32.mrb[0].mxu0
  %v2473 = vadd.f32 0.0, %v2472
  %v2474 = vpop.f32.mrb[0].mxu0
  %2475 = vmatprep.mubr.f32.mxu0 0.0
  %2476 = vmatmul.mubr.f32.gmra.mrb[0].mxu0 %v2268
  %v2477 = vpop.f32.mrb[0].mxu0
  %v2478 = vadd.f32 0.0, %v2477
  %v2479 = vpop.f32.mrb[0].mxu0
  %2480 = vmatprep.mubr.f32.mxu0 0.0
  %2481 = vmatmul.mubr.f32.gmra.mrb[0].mxu0 %v2270
  %v2482 = vpop.f32.mrb[0].mxu0
  %v2483 = vadd.f32 0.0, %v2482
  %v2484 = vpop.f32.mrb[0].mxu0
  %2485 = vmatprep.mubr.f32.mxu0 0.0
  %2486 = vmatmul.mubr.f32.gmra.mrb[0].mxu0 %v2272
  %v2487 = vpop.f32.mrb[0].mxu0
  %v2488 = vadd.f32 0.0, %v2487
  %v2489 = vpop.f32.mrb[0].mxu0
  %2490 = vmatprep.mubr.f32.mxu0 0.0
  %2491 = vmatmul.mubr.f32.gmra.mrb[0].mxu0 %v2274
  %v2492 = vpop.f32.mrb[0].mxu0
  %v2493 = vadd.f32 0.0, %v2492
  %v2494 = vpop.f32.mrb[0].mxu0
  %2495 = vmatprep.mubr.f32.mxu0 0.0
  %2496 = vmatmul.mubr.f32.gmra.mrb[0].mxu0 %v2276
  %v2497 = vpop.f32.mrb[0].mxu0
  %v2498 = vadd.f32 0.0, %v2497
  %v2499 = vpop.f32.mrb[0].mxu0
  %2500 = vmatprep.mubr.f32.mxu0 0.0
  %2501 = vmatmul.mubr.f32.gmra.mrb[0].mxu0 %v2279
  %v2502 = vpop.f32.mrb[0].mxu0
  %v2503 = vadd.f32 0.0, %v2502
  %v2504 = vpop.f32.mrb[0].mxu0
  %2505 = vdwg.mxu0
  %v2506 = vadd.f32 %v2055, %v2348
  %v2507 = vadd.f32 %v2060, %v2353
  %v2508 = vadd.f32 %v2065, %v2358
  %v2509 = vadd.f32 %v2070, %v2363
  %v2510 = vadd.f32 %v2075, %v2368
  %v2511 = vadd.f32 %v2080, %v2373
  %v2512 = vadd.f32 %v2085, %v2378
  %v2513 = vadd.f32 %v2090, %v2383
  %v2514 = vadd.f32 %v2095, %v2388
  %v2515 = vadd.f32 %v2100, %v2393
  %v2516 = vadd.f32 %v2105, %v2398
  %v2517 = vadd.f32 %v2110, %v2403
  %v2518 = vadd.f32 %v2115, %v2408
  %v2519 = vadd.f32 %v2120, %v2413
  %v2520 = vadd.f32 %v2125, %v2418
  %v2521 = vadd.f32 %v2130, %v2423
  %v2522 = vadd.f32 %v2135, %v2428
  %v2523 = vadd.f32 %v2140, %v2433
  %v2524 = vadd.f32 %v2145, %v2438
  %v2525 = vadd.f32 %v2150, %v2443
  %v2526 = vadd.f32 %v2155, %v2448
  %v2527 = vadd.f32 %v2160, %v2453
  %v2528 = vadd.f32 %v2165, %v2458
  %v2529 = vadd.f32 %v2170, %v2463
  %v2530 = vadd.f32 %v2175, %v2468
  %v2531 = vadd.f32 %v2180, %v2473
  %v2532 = vadd.f32 %v2185, %v2478
  %v2533 = vadd.f32 %v2190, %v2483
  %v2534 = vadd.f32 %v2195, %v2488
  %v2535 = vadd.f32 %v2200, %v2493
  %v2536 = vadd.f32 %v2205, %v2498
  %v2537 = vadd.f32 %v2210, %v2503
  %v2538 = vld [vmem:[%s4] sm:$0x3]
  %v2539 = vsel %vm1134, %v2506, 0.0
  %v2540 = vsel %vm1134, %v2507, 0.0
  %v2541 = vadd.f32 %v2539, %v2540
  %v2542 = vsel %vm1134, %v2508, 0.0
  %v2543 = vadd.f32 %v2541, %v2542
  %v2544 = vsel %vm1134, %v2509, 0.0
  %v2545 = vadd.f32 %v2543, %v2544
  %v2546 = vsel %vm1134, %v2510, 0.0
  %v2547 = vadd.f32 %v2545, %v2546
  %v2548 = vsel %vm1134, %v2511, 0.0
  %v2549 = vadd.f32 %v2547, %v2548
  %v2550 = vsel %vm1134, %v2512, 0.0
  %v2551 = vadd.f32 %v2549, %v2550
  %v2552 = vsel %vm1134, %v2513, 0.0
  %v2553 = vadd.f32 %v2551, %v2552
  %v2554 = vsel %vm1134, %v2514, 0.0
  %v2555 = vadd.f32 %v2553, %v2554
  %v2556 = vsel %vm1134, %v2515, 0.0
  %v2557 = vadd.f32 %v2555, %v2556
  %v2558 = vsel %vm1134, %v2516, 0.0
  %v2559 = vadd.f32 %v2557, %v2558
  %v2560 = vsel %vm1134, %v2517, 0.0
  %v2561 = vadd.f32 %v2559, %v2560
  %v2562 = vsel %vm1134, %v2518, 0.0
  %v2563 = vadd.f32 %v2561, %v2562
  %v2564 = vsel %vm1134, %v2519, 0.0
  %v2565 = vadd.f32 %v2563, %v2564
  %v2566 = vsel %vm1134, %v2520, 0.0
  %v2567 = vadd.f32 %v2565, %v2566
  %v2568 = vsel %vm1134, %v2521, 0.0
  %v2569 = vadd.f32 %v2567, %v2568
  %v2570 = vsel %vm1134, %v2522, 0.0
  %v2571 = vadd.f32 %v2569, %v2570
  %v2572 = vsel %vm1134, %v2523, 0.0
  %v2573 = vadd.f32 %v2571, %v2572
  %v2574 = vsel %vm1134, %v2524, 0.0
  %v2575 = vadd.f32 %v2573, %v2574
  %v2576 = vsel %vm1134, %v2525, 0.0
  %v2577 = vadd.f32 %v2575, %v2576
  %v2578 = vsel %vm1134, %v2526, 0.0
  %v2579 = vadd.f32 %v2577, %v2578
  %v2580 = vsel %vm1134, %v2527, 0.0
  %v2581 = vadd.f32 %v2579, %v2580
  %v2582 = vsel %vm1134, %v2528, 0.0
  %v2583 = vadd.f32 %v2581, %v2582
  %v2584 = vsel %vm1134, %v2529, 0.0
  %v2585 = vadd.f32 %v2583, %v2584
  %v2586 = vsel %vm1134, %v2530, 0.0
  %v2587 = vadd.f32 %v2585, %v2586
  %v2588 = vsel %vm1134, %v2531, 0.0
  %v2589 = vadd.f32 %v2587, %v2588
  %v2590 = vsel %vm1134, %v2532, 0.0
  %v2591 = vadd.f32 %v2589, %v2590
  %v2592 = vsel %vm1134, %v2533, 0.0
  %v2593 = vadd.f32 %v2591, %v2592
  %v2594 = vsel %vm1134, %v2534, 0.0
  %v2595 = vadd.f32 %v2593, %v2594
  %v2596 = vsel %vm1134, %v2535, 0.0
  %v2597 = vadd.f32 %v2595, %v2596
  %v2598 = vsel %vm1134, %v2536, 0.0
  %v2599 = vadd.f32 %v2597, %v2598
  %v2600 = vsel %vm1134, %v2537, 0.0
  %v2601 = vadd.f32 %v2599, %v2600
  %v2602 = vrot.slane %v2601, 4
  %v2603 = vadd.f32 %v2601, %v2602
  %v2604 = vrot.slane %v2603, 2
  %v2605 = vadd.f32 %v2603, %v2604
  %v2606 = vrot.slane %v2605, 1
  %v2607 = vadd.f32 %v2605, %v2606
  %v2608 = vmul.f32 %v2607, 0.00390625
  %v2609 = vsub.f32 %v2506, %v2608
  %v2610 = vsub.f32 %v2507, %v2608
  %v2611 = vsub.f32 %v2508, %v2608
  %v2612 = vsub.f32 %v2509, %v2608
  %v2613 = vsub.f32 %v2510, %v2608
  %v2614 = vsub.f32 %v2511, %v2608
  %v2615 = vsub.f32 %v2512, %v2608
  %v2616 = vsub.f32 %v2513, %v2608
  %v2617 = vsub.f32 %v2514, %v2608
  %v2618 = vsub.f32 %v2515, %v2608
  %v2619 = vsub.f32 %v2516, %v2608
  %v2620 = vsub.f32 %v2517, %v2608
  %v2621 = vsub.f32 %v2518, %v2608
  %v2622 = vsub.f32 %v2519, %v2608
  %v2623 = vsub.f32 %v2520, %v2608
  %v2624 = vsub.f32 %v2521, %v2608
  %v2625 = vsub.f32 %v2522, %v2608
  %v2626 = vsub.f32 %v2523, %v2608
  %v2627 = vsub.f32 %v2524, %v2608
  %v2628 = vsub.f32 %v2525, %v2608
  %v2629 = vsub.f32 %v2526, %v2608
  %v2630 = vsub.f32 %v2527, %v2608
  %v2631 = vsub.f32 %v2528, %v2608
  %v2632 = vsub.f32 %v2529, %v2608
  %v2633 = vsub.f32 %v2530, %v2608
  %v2634 = vsub.f32 %v2531, %v2608
  %v2635 = vsub.f32 %v2532, %v2608
  %v2636 = vsub.f32 %v2533, %v2608
  %v2637 = vsub.f32 %v2534, %v2608
  %v2638 = vsub.f32 %v2535, %v2608
  %v2639 = vsub.f32 %v2536, %v2608
  %v2640 = vsub.f32 %v2537, %v2608
  %v2641 = vmul.f32 %v2609, %v2609
  %v2642 = vmul.f32 %v2610, %v2610
  %v2643 = vmul.f32 %v2611, %v2611
  %v2644 = vmul.f32 %v2612, %v2612
  %v2645 = vmul.f32 %v2613, %v2613
  %v2646 = vmul.f32 %v2614, %v2614
  %v2647 = vmul.f32 %v2615, %v2615
  %v2648 = vmul.f32 %v2616, %v2616
  %v2649 = vmul.f32 %v2617, %v2617
  %v2650 = vmul.f32 %v2618, %v2618
  %v2651 = vmul.f32 %v2619, %v2619
  %v2652 = vmul.f32 %v2620, %v2620
  %v2653 = vmul.f32 %v2621, %v2621
  %v2654 = vmul.f32 %v2622, %v2622
  %v2655 = vmul.f32 %v2623, %v2623
  %v2656 = vmul.f32 %v2624, %v2624
  %v2657 = vmul.f32 %v2625, %v2625
  %v2658 = vmul.f32 %v2626, %v2626
  %v2659 = vmul.f32 %v2627, %v2627
  %v2660 = vmul.f32 %v2628, %v2628
  %v2661 = vmul.f32 %v2629, %v2629
  %v2662 = vmul.f32 %v2630, %v2630
  %v2663 = vmul.f32 %v2631, %v2631
  %v2664 = vmul.f32 %v2632, %v2632
  %v2665 = vmul.f32 %v2633, %v2633
  %v2666 = vmul.f32 %v2634, %v2634
  %v2667 = vmul.f32 %v2635, %v2635
  %v2668 = vmul.f32 %v2636, %v2636
  %v2669 = vmul.f32 %v2637, %v2637
  %v2670 = vmul.f32 %v2638, %v2638
  %v2671 = vmul.f32 %v2639, %v2639
  %v2672 = vmul.f32 %v2640, %v2640
  %v2673 = vsel %vm1134, %v2641, 0.0
  %v2674 = vsel %vm1134, %v2642, 0.0
  %v2675 = vadd.f32 %v2673, %v2674
  %v2676 = vsel %vm1134, %v2643, 0.0
  %v2677 = vadd.f32 %v2675, %v2676
  %v2678 = vsel %vm1134, %v2644, 0.0
  %v2679 = vadd.f32 %v2677, %v2678
  %v2680 = vsel %vm1134, %v2645, 0.0
  %v2681 = vadd.f32 %v2679, %v2680
  %v2682 = vsel %vm1134, %v2646, 0.0
  %v2683 = vadd.f32 %v2681, %v2682
  %v2684 = vsel %vm1134, %v2647, 0.0
  %v2685 = vadd.f32 %v2683, %v2684
  %v2686 = vsel %vm1134, %v2648, 0.0
  %v2687 = vadd.f32 %v2685, %v2686
  %v2688 = vsel %vm1134, %v2649, 0.0
  %v2689 = vadd.f32 %v2687, %v2688
  %v2690 = vsel %vm1134, %v2650, 0.0
  %v2691 = vadd.f32 %v2689, %v2690
  %v2692 = vsel %vm1134, %v2651, 0.0
  %v2693 = vadd.f32 %v2691, %v2692
  %v2694 = vsel %vm1134, %v2652, 0.0
  %v2695 = vadd.f32 %v2693, %v2694
  %v2696 = vsel %vm1134, %v2653, 0.0
  %v2697 = vadd.f32 %v2695, %v2696
  %v2698 = vsel %vm1134, %v2654, 0.0
  %v2699 = vadd.f32 %v2697, %v2698
  %v2700 = vsel %vm1134, %v2655, 0.0
  %v2701 = vadd.f32 %v2699, %v2700
  %v2702 = vsel %vm1134, %v2656, 0.0
  %v2703 = vadd.f32 %v2701, %v2702
  %v2704 = vsel %vm1134, %v2657, 0.0
  %v2705 = vadd.f32 %v2703, %v2704
  %v2706 = vsel %vm1134, %v2658, 0.0
  %v2707 = vadd.f32 %v2705, %v2706
  %v2708 = vsel %vm1134, %v2659, 0.0
  %v2709 = vadd.f32 %v2707, %v2708
  %v2710 = vsel %vm1134, %v2660, 0.0
  %v2711 = vadd.f32 %v2709, %v2710
  %v2712 = vsel %vm1134, %v2661, 0.0
  %v2713 = vadd.f32 %v2711, %v2712
  %v2714 = vsel %vm1134, %v2662, 0.0
  %v2715 = vadd.f32 %v2713, %v2714
  %v2716 = vsel %vm1134, %v2663, 0.0
  %v2717 = vadd.f32 %v2715, %v2716
  %v2718 = vsel %vm1134, %v2664, 0.0
  %v2719 = vadd.f32 %v2717, %v2718
  %v2720 = vsel %vm1134, %v2665, 0.0
  %v2721 = vadd.f32 %v2719, %v2720
  %v2722 = vsel %vm1134, %v2666, 0.0
  %v2723 = vadd.f32 %v2721, %v2722
  %v2724 = vsel %vm1134, %v2667, 0.0
  %v2725 = vadd.f32 %v2723, %v2724
  %v2726 = vsel %vm1134, %v2668, 0.0
  %v2727 = vadd.f32 %v2725, %v2726
  %v2728 = vsel %vm1134, %v2669, 0.0
  %v2729 = vadd.f32 %v2727, %v2728
  %v2730 = vsel %vm1134, %v2670, 0.0
  %v2731 = vadd.f32 %v2729, %v2730
  %v2732 = vsel %vm1134, %v2671, 0.0
  %v2733 = vadd.f32 %v2731, %v2732
  %v2734 = vsel %vm1134, %v2672, 0.0
  %v2735 = vadd.f32 %v2733, %v2734
  %v2736 = vrot.slane %v2735, 4
  %v2737 = vadd.f32 %v2735, %v2736
  %v2738 = vrot.slane %v2737, 2
  %v2739 = vadd.f32 %v2737, %v2738
  %v2740 = vrot.slane %v2739, 1
  %v2741 = vadd.f32 %v2739, %v2740
  %v2742 = vmul.f32 %v2741, 0.00390625
  %v2743 = vadd.f32 %v2742, 1e-05
  %v2744 = vrsqrt.pop %v2743
  %v2745 = vmul.f32 %v2538, %v2744
  %v2746 = vmul.f32 %v2608, %v2745
  %v2748 = vrot.slane %v2746, 7
  %v2750 = vsub.f32 %v2538, %v2748
  %v2751 = vlaneseq
  %v2752 = vshrl.u32 %v2751, 7
  %v2753 = vsub.s32 0, %v2752
  %v2754 = vrot.slane %v2745, %v2753
  %v2755 = vmul.f32 %v2506, %v2754
  %v2756 = vmul.f32 %v2507, %v2754
  %v2757 = vmul.f32 %v2508, %v2754
  %v2758 = vmul.f32 %v2509, %v2754
  %v2759 = vmul.f32 %v2510, %v2754
  %v2760 = vmul.f32 %v2511, %v2754
  %v2761 = vmul.f32 %v2512, %v2754
  %v2762 = vmul.f32 %v2513, %v2754
  %v2763 = vmul.f32 %v2514, %v2754
  %v2764 = vmul.f32 %v2515, %v2754
  %v2765 = vmul.f32 %v2516, %v2754
  %v2766 = vmul.f32 %v2517, %v2754
  %v2767 = vmul.f32 %v2518, %v2754
  %v2768 = vmul.f32 %v2519, %v2754
  %v2769 = vmul.f32 %v2520, %v2754
  %v2770 = vmul.f32 %v2521, %v2754
  %v2771 = vmul.f32 %v2522, %v2754
  %v2772 = vmul.f32 %v2523, %v2754
  %v2773 = vmul.f32 %v2524, %v2754
  %v2774 = vmul.f32 %v2525, %v2754
  %v2775 = vmul.f32 %v2526, %v2754
  %v2776 = vmul.f32 %v2527, %v2754
  %v2777 = vmul.f32 %v2528, %v2754
  %v2778 = vmul.f32 %v2529, %v2754
  %v2779 = vmul.f32 %v2530, %v2754
  %v2780 = vmul.f32 %v2531, %v2754
  %v2781 = vmul.f32 %v2532, %v2754
  %v2782 = vmul.f32 %v2533, %v2754
  %v2783 = vmul.f32 %v2534, %v2754
  %v2784 = vmul.f32 %v2535, %v2754
  %v2785 = vmul.f32 %v2536, %v2754
  %v2786 = vmul.f32 %v2537, %v2754
  %v2787 = vlaneseq
  %v2788 = vshrl.u32 %v2787, 7
  %v2789 = vsub.s32 1, %v2788
  %v2790 = vrot.slane %v2750, %v2789
  %v2791 = vadd.f32 %v2755, %v2790
  %v2792 = vadd.f32 %v2756, %v2790
  %v2793 = vadd.f32 %v2757, %v2790
  %v2794 = vadd.f32 %v2758, %v2790
  %v2795 = vadd.f32 %v2759, %v2790
  %v2796 = vadd.f32 %v2760, %v2790
  %v2797 = vadd.f32 %v2761, %v2790
  %v2798 = vadd.f32 %v2762, %v2790
  %v2799 = vadd.f32 %v2763, %v2790
  %v2800 = vadd.f32 %v2764, %v2790
  %v2801 = vadd.f32 %v2765, %v2790
  %v2802 = vadd.f32 %v2766, %v2790
  %v2803 = vadd.f32 %v2767, %v2790
  %v2804 = vadd.f32 %v2768, %v2790
  %v2805 = vadd.f32 %v2769, %v2790
  %v2806 = vadd.f32 %v2770, %v2790
  %v2807 = vadd.f32 %v2771, %v2790
  %v2808 = vadd.f32 %v2772, %v2790
  %v2809 = vadd.f32 %v2773, %v2790
  %v2810 = vadd.f32 %v2774, %v2790
  %v2811 = vadd.f32 %v2775, %v2790
  %v2812 = vadd.f32 %v2776, %v2790
  %v2813 = vadd.f32 %v2777, %v2790
  %v2814 = vadd.f32 %v2778, %v2790
  %v2815 = vadd.f32 %v2779, %v2790
  %v2816 = vadd.f32 %v2780, %v2790
  %v2817 = vadd.f32 %v2781, %v2790
  %v2818 = vadd.f32 %v2782, %v2790
  %v2819 = vadd.f32 %v2783, %v2790
  %v2820 = vadd.f32 %v2784, %v2790
  %v2821 = vadd.f32 %v2785, %v2790
  %v2822 = vadd.f32 %v2786, %v2790
  %v2823 = vmax.f32 %v2791, 0.0
  %v2824 = vmax.f32 %v2792, 0.0
  %v2825 = vmax.f32 %v2793, 0.0
  %v2826 = vmax.f32 %v2794, 0.0
  %v2827 = vmax.f32 %v2795, 0.0
  %v2828 = vmax.f32 %v2796, 0.0
  %v2829 = vmax.f32 %v2797, 0.0
  %v2830 = vmax.f32 %v2798, 0.0
  %v2831 = vmax.f32 %v2799, 0.0
  %v2832 = vmax.f32 %v2800, 0.0
  %v2833 = vmax.f32 %v2801, 0.0
  %v2834 = vmax.f32 %v2802, 0.0
  %v2835 = vmax.f32 %v2803, 0.0
  %v2836 = vmax.f32 %v2804, 0.0
  %v2837 = vmax.f32 %v2805, 0.0
  %v2838 = vmax.f32 %v2806, 0.0
  %v2839 = vmax.f32 %v2807, 0.0
  %v2840 = vmax.f32 %v2808, 0.0
  %v2841 = vmax.f32 %v2809, 0.0
  %v2842 = vmax.f32 %v2810, 0.0
  %v2843 = vmax.f32 %v2811, 0.0
  %v2844 = vmax.f32 %v2812, 0.0
  %v2845 = vmax.f32 %v2813, 0.0
  %v2846 = vmax.f32 %v2814, 0.0
  %v2847 = vmax.f32 %v2815, 0.0
  %v2848 = vmax.f32 %v2816, 0.0
  %v2849 = vmax.f32 %v2817, 0.0
  %v2850 = vmax.f32 %v2818, 0.0
  %v2851 = vmax.f32 %v2819, 0.0
  %v2852 = vmax.f32 %v2820, 0.0
  %v2853 = vmax.f32 %v2821, 0.0
  %v2854 = vmax.f32 %v2822, 0.0
  %2855 = vst.msk [vmem:[%s5] sm:$0xff] %vm1134, %v2823
  %2856 = vst.msk [vmem:[%s5 + $0x8] sm:$0xff] %vm1134, %v2824
  %2857 = vst.msk [vmem:[%s5 + $0x10] sm:$0xff] %vm1134, %v2825
  %2858 = vst.msk [vmem:[%s5 + $0x18] sm:$0xff] %vm1134, %v2826
  %2859 = vst.msk [vmem:[%s5 + $0x20] sm:$0xff] %vm1134, %v2827
  %2860 = vst.msk [vmem:[%s5 + $0x28] sm:$0xff] %vm1134, %v2828
  %2861 = vst.msk [vmem:[%s5 + $0x30] sm:$0xff] %vm1134, %v2829
  %2862 = vst.msk [vmem:[%s5 + $0x38] sm:$0xff] %vm1134, %v2830
  %2863 = vst.msk [vmem:[%s5 + $0x40] sm:$0xff] %vm1134, %v2831
  %2864 = vst.msk [vmem:[%s5 + $0x48] sm:$0xff] %vm1134, %v2832
  %2865 = vst.msk [vmem:[%s5 + $0x50] sm:$0xff] %vm1134, %v2833
  %2866 = vst.msk [vmem:[%s5 + $0x58] sm:$0xff] %vm1134, %v2834
  %2867 = vst.msk [vmem:[%s5 + $0x60] sm:$0xff] %vm1134, %v2835
  %2868 = vst.msk [vmem:[%s5 + $0x68] sm:$0xff] %vm1134, %v2836
  %2869 = vst.msk [vmem:[%s5 + $0x70] sm:$0xff] %vm1134, %v2837
  %2870 = vst.msk [vmem:[%s5 + $0x78] sm:$0xff] %vm1134, %v2838
  %2871 = vst.msk [vmem:[%s5 + $0x80] sm:$0xff] %vm1134, %v2839
  %2872 = vst.msk [vmem:[%s5 + $0x88] sm:$0xff] %vm1134, %v2840
  %2873 = vst.msk [vmem:[%s5 + $0x90] sm:$0xff] %vm1134, %v2841
  %2874 = vst.msk [vmem:[%s5 + $0x98] sm:$0xff] %vm1134, %v2842
  %2875 = vst.msk [vmem:[%s5 + $0xa0] sm:$0xff] %vm1134, %v2843
  %2876 = vst.msk [vmem:[%s5 + $0xa8] sm:$0xff] %vm1134, %v2844
  %2877 = vst.msk [vmem:[%s5 + $0xb0] sm:$0xff] %vm1134, %v2845
  %2878 = vst.msk [vmem:[%s5 + $0xb8] sm:$0xff] %vm1134, %v2846
  %2879 = vst.msk [vmem:[%s5 + $0xc0] sm:$0xff] %vm1134, %v2847
  %2880 = vst.msk [vmem:[%s5 + $0xc8] sm:$0xff] %vm1134, %v2848
  %2881 = vst.msk [vmem:[%s5 + $0xd0] sm:$0xff] %vm1134, %v2849
  %2882 = vst.msk [vmem:[%s5 + $0xd8] sm:$0xff] %vm1134, %v2850
  %2883 = vst.msk [vmem:[%s5 + $0xe0] sm:$0xff] %vm1134, %v2851
  %2884 = vst.msk [vmem:[%s5 + $0xe8] sm:$0xff] %vm1134, %v2852
  %2885 = vst.msk [vmem:[%s5 + $0xf0] sm:$0xff] %vm1134, %v2853
  %2886 = vst.msk [vmem:[%s5 + $0xf8] sm:$0xff] %vm1134, %v2854
  // Predicated region
  $region22: #{encoder_forward.1} parent=0 // pred_check
    _
  $region23: #{encoder_forward.1} parent=0 // pred_check_branch
    %2888 = sbr.rel (0) target = $region25
  $region24: #{encoder_forward.1} parent=0 // pred_region
    _
  $region25: #{encoder_forward.1} parent=0 // pred_fallthru
    _
  // Predicated region
  $region26: #{encoder_forward.1} parent=0 // pred_check
    _
  $region27: #{encoder_forward.1} parent=0 // pred_check_branch
    %2890 = sbr.rel (0) target = $region29
  $region28: #{encoder_forward.1} parent=0 // pred_region
    _
  $region29: #{encoder_forward.1} parent=0 // pred_fallthru
    _

</llo_original>
